<compile_context>
chip_gen: v6e
topology: v6e:2x2x1
jax: 0.10.0
libtpu: 0.0.40
codegen_flags: <defaults>
</compile_context>

<pallas_src>
import functools
import math

import numpy as np
import jax
import jax.numpy as jnp
from jax.experimental import pallas as pl
from jax.experimental.pallas import tpu as pltpu


def _gaussian_kernel1d(size: int, sigma: float) -> np.ndarray:
    # Matches torchvision transforms.GaussianBlur 1-D kernel construction.
    half = (size - 1) * 0.5
    xs = np.linspace(-half, half, size)
    pdf = np.exp(-0.5 * (xs / sigma) ** 2)
    return (pdf / pdf.sum()).astype(np.float32)


_TAN_22_5 = math.tan(math.radians(22.5))
_TAN_67_5 = math.tan(math.radians(67.5))


def _canny_block_kernel(xp_ref, out_ref, *, k1d, size, H, W,
                        low_t, high_t, strong_pixel, weak_pixel):
    # xp_ref block: (Pb, H + 2*pad, W + 2*pad) reflect-padded f32 planes,
    # pad = size//2 + 1 (Gaussian radius + 1-pixel Sobel halo).
    xp = xp_ref[...]
    Hs, Ws = H + 2, W + 2          # blurred region (Sobel needs 1-px halo)

    # ---- separable Gaussian blur ----
    tmp = float(k1d[0]) * xp[:, :, 0:Ws]
    for b in range(1, size):
        tmp = tmp + float(k1d[b]) * xp[:, :, b:b + Ws]
    blur = float(k1d[0]) * tmp[:, 0:Hs, :]
    for a in range(1, size):
        blur = blur + float(k1d[a]) * tmp[:, a:a + Hs, :]
    # blur: (Pb, H+2, W+2)

    # ---- separable Sobel gradients ----
    sx = blur[:, 0:H, :] + 2.0 * blur[:, 1:H + 1, :] + blur[:, 2:H + 2, :]
    ix = sx[:, :, 2:W + 2] - sx[:, :, 0:W]                     # (Pb, H, W)
    sy = blur[:, :, 0:W] + 2.0 * blur[:, :, 1:W + 1] + blur[:, :, 2:W + 2]
    iy = sy[:, 0:H, :] - sy[:, 2:H + 2, :]                     # (Pb, H, W)

    # squared gradient magnitude (sqrt / normalization dropped: all later
    # comparisons are scale invariant, output {0,75,255} is unchanged).
    g2 = ix * ix + iy * iy

    # ---- non-max suppression on the interior (border is zero anyway) ----
    g2c = g2[:, 1:H - 1, 1:W - 1]
    ixc = ix[:, 1:H - 1, 1:W - 1]
    iyc = iy[:, 1:H - 1, 1:W - 1]
    aix = jnp.abs(ixc)
    aiy = jnp.abs(iyc)
    is_0 = aiy < _TAN_22_5 * aix            # angle in [0,22.5)|[157.5,180]
    is_90 = aiy >= _TAN_67_5 * aix          # angle in [67.5,112.5)
    is_45 = (ixc * iyc) > 0.0               # else: 45 vs 135 bin

    def nb(dy, dx):                         # neighbour squared magnitudes
        return g2[:, 1 + dy:H - 1 + dy, 1 + dx:W - 1 + dx]

    q = jnp.where(is_0, nb(0, 1),
        jnp.where(is_90, nb(1, 0),
        jnp.where(is_45, nb(1, -1), nb(-1, -1))))
    r = jnp.where(is_0, nb(0, -1),
        jnp.where(is_90, nb(-1, 0),
        jnp.where(is_45, nb(-1, 1), nb(1, 1))))

    keep = (g2c >= q) & (g2c >= r)
    z2 = jnp.where(keep, g2c, 0.0)          # (Pb, H-2, W-2)

    # ---- double threshold (per plane, max-relative) in squared domain ----
    m2 = jnp.max(jnp.max(z2, axis=2, keepdims=True), axis=1, keepdims=True)
    high2 = m2 * (high_t * high_t)
    low2 = high2 * (low_t * low_t)
    edges = jnp.where(z2 >= high2, strong_pixel,
                      jnp.where(z2 >= low2, weak_pixel, 0.0))

    out_ref[...] = jnp.zeros_like(out_ref)              # 1-px zero border
    out_ref[:, 1:H - 1, 1:W - 1] = edges.astype(out_ref.dtype)


def canny_edge_filter(x, *, size=5, low_threshold=0.05, high_threshold=0.15,
                      sigma=1.0):
    N, C, H, W = x.shape
    assert size % 2 == 1 and size >= 3, "Gaussian size must be odd >= 3"
    pad = size // 2 + 1                    # gaussian radius + sobel halo
    assert H > pad and W > pad, "image too small for reflect padding"
    P = N * C
    planes = x.astype(jnp.float32).reshape(P, H, W)
    xp = jnp.pad(planes, ((0, 0), (pad, pad), (pad, pad)), mode="reflect")
    Hp, Wp = H + 2 * pad, W + 2 * pad

    # Planes per grid step: cap VMEM footprint (~14 plane-sized f32 live
    # intermediates) well under the v5e 16 MiB scoped default / v7x 64 MiB
    # physical VMEM, and keep >= 2 grid steps so v7x megacore can shard them.
    per_plane_bytes = 14 * Hp * Wp * 4
    budget_planes = max(1, (4 << 20) // per_plane_bytes)
    pb = max(1, min(budget_planes, -(-P // 2)))
    Pp = -(-P // pb) * pb
    if Pp != P:
        xp = jnp.pad(xp, ((0, Pp - P), (0, 0), (0, 0)))

    k1d = _gaussian_kernel1d(size, float(sigma))
    kernel = functools.partial(
        _canny_block_kernel, k1d=tuple(float(v) for v in k1d), size=size,
        H=H, W=W, low_t=float(low_threshold), high_t=float(high_threshold),
        strong_pixel=255.0, weak_pixel=75.0)

    out = pl.pallas_call(
        kernel,
        out_shape=jax.ShapeDtypeStruct((Pp, H, W), jnp.float32),
        grid=(Pp // pb,),
        in_specs=[pl.BlockSpec((pb, Hp, Wp), lambda p: (p, 0, 0))],
        out_specs=pl.BlockSpec((pb, H, W), lambda p: (p, 0, 0)),
        compiler_params=pltpu.CompilerParams(
            dimension_semantics=("parallel",)),
    )(xp)
    return out[:P].reshape(N, C, H, W)


if __name__ == "__main__":
    key = jax.random.PRNGKey(0)
    x = jax.random.uniform(key, (2, 4, 16, 16), dtype=jnp.float32)
    y = canny_edge_filter(x, size=5, low_threshold=0.05, high_threshold=0.15,
                          sigma=1.0)
    jax.block_until_ready(y)
    assert y.shape == (2, 4, 16, 16) and y.dtype == jnp.float32
    vals_ok = jnp.all((y == 0.0) | (y == 75.0) | (y == 255.0))
    assert bool(vals_ok)
    print("KERNEL_OK")
</pallas_src>

<mosaic_0001>
module attributes {stable_mosaic.version = 11 : i64} {
  func.func @_canny_block_kernel(%arg0: i32, %arg1: memref<4x22x22xf32, #tpu.memory_space<vmem>>, %arg2: memref<4x16x16xf32, #tpu.memory_space<vmem>>) attributes {dimension_semantics = [#tpu.dimension_semantics<parallel>], iteration_bounds = array<i64: 2>, scalar_prefetch = 0 : i64, scratch_operands = 0 : i64, tpu.core_type = #tpu.core_type<tc>, window_params = [{transform_indices = @transform_0, window_bounds = array<i64: 4, 22, 22>}, {transform_indices = @transform_1, window_bounds = array<i64: 4, 16, 16>}]} {
    %c0 = arith.constant 0 : index
    %c0_0 = arith.constant 0 : index
    %c0_1 = arith.constant 0 : index
    %0 = vector.load %arg1[%c0, %c0_0, %c0_1] : memref<4x22x22xf32, #tpu.memory_space<vmem>>, vector<4x22x22xf32>
    %1 = vector.extract_strided_slice %0 {offsets = [0, 0, 0], sizes = [4, 22, 18], strides = [1, 1, 1]} : vector<4x22x22xf32> to vector<4x22x18xf32>
    %cst = arith.constant 0.054488685 : f32
    %2 = vector.broadcast %cst : f32 to vector<4x22x18xf32>
    %3 = arith.mulf %2, %1 : vector<4x22x18xf32>
    %4 = vector.extract_strided_slice %0 {offsets = [0, 0, 1], sizes = [4, 22, 18], strides = [1, 1, 1]} : vector<4x22x22xf32> to vector<4x22x18xf32>
    %cst_2 = arith.constant 0.244201347 : f32
    %5 = vector.broadcast %cst_2 : f32 to vector<4x22x18xf32>
    %6 = arith.mulf %5, %4 : vector<4x22x18xf32>
    %7 = arith.addf %3, %6 : vector<4x22x18xf32>
    %8 = vector.extract_strided_slice %0 {offsets = [0, 0, 2], sizes = [4, 22, 18], strides = [1, 1, 1]} : vector<4x22x22xf32> to vector<4x22x18xf32>
    %cst_3 = arith.constant 0.402619958 : f32
    %9 = vector.broadcast %cst_3 : f32 to vector<4x22x18xf32>
    %10 = arith.mulf %9, %8 : vector<4x22x18xf32>
    %11 = arith.addf %7, %10 : vector<4x22x18xf32>
    %12 = vector.extract_strided_slice %0 {offsets = [0, 0, 3], sizes = [4, 22, 18], strides = [1, 1, 1]} : vector<4x22x22xf32> to vector<4x22x18xf32>
    %cst_4 = arith.constant 0.244201347 : f32
    %13 = vector.broadcast %cst_4 : f32 to vector<4x22x18xf32>
    %14 = arith.mulf %13, %12 : vector<4x22x18xf32>
    %15 = arith.addf %11, %14 : vector<4x22x18xf32>
    %16 = vector.extract_strided_slice %0 {offsets = [0, 0, 4], sizes = [4, 22, 18], strides = [1, 1, 1]} : vector<4x22x22xf32> to vector<4x22x18xf32>
    %cst_5 = arith.constant 0.054488685 : f32
    %17 = vector.broadcast %cst_5 : f32 to vector<4x22x18xf32>
    %18 = arith.mulf %17, %16 : vector<4x22x18xf32>
    %19 = arith.addf %15, %18 : vector<4x22x18xf32>
    %20 = vector.extract_strided_slice %19 {offsets = [0, 0, 0], sizes = [4, 18, 18], strides = [1, 1, 1]} : vector<4x22x18xf32> to vector<4x18x18xf32>
    %cst_6 = arith.constant 0.054488685 : f32
    %21 = vector.broadcast %cst_6 : f32 to vector<4x18x18xf32>
    %22 = arith.mulf %21, %20 : vector<4x18x18xf32>
    %23 = vector.extract_strided_slice %19 {offsets = [0, 1, 0], sizes = [4, 18, 18], strides = [1, 1, 1]} : vector<4x22x18xf32> to vector<4x18x18xf32>
    %cst_7 = arith.constant 0.244201347 : f32
    %24 = vector.broadcast %cst_7 : f32 to vector<4x18x18xf32>
    %25 = arith.mulf %24, %23 : vector<4x18x18xf32>
    %26 = arith.addf %22, %25 : vector<4x18x18xf32>
    %27 = vector.extract_strided_slice %19 {offsets = [0, 2, 0], sizes = [4, 18, 18], strides = [1, 1, 1]} : vector<4x22x18xf32> to vector<4x18x18xf32>
    %cst_8 = arith.constant 0.402619958 : f32
    %28 = vector.broadcast %cst_8 : f32 to vector<4x18x18xf32>
    %29 = arith.mulf %28, %27 : vector<4x18x18xf32>
    %30 = arith.addf %26, %29 : vector<4x18x18xf32>
    %31 = vector.extract_strided_slice %19 {offsets = [0, 3, 0], sizes = [4, 18, 18], strides = [1, 1, 1]} : vector<4x22x18xf32> to vector<4x18x18xf32>
    %cst_9 = arith.constant 0.244201347 : f32
    %32 = vector.broadcast %cst_9 : f32 to vector<4x18x18xf32>
    %33 = arith.mulf %32, %31 : vector<4x18x18xf32>
    %34 = arith.addf %30, %33 : vector<4x18x18xf32>
    %35 = vector.extract_strided_slice %19 {offsets = [0, 4, 0], sizes = [4, 18, 18], strides = [1, 1, 1]} : vector<4x22x18xf32> to vector<4x18x18xf32>
    %cst_10 = arith.constant 0.054488685 : f32
    %36 = vector.broadcast %cst_10 : f32 to vector<4x18x18xf32>
    %37 = arith.mulf %36, %35 : vector<4x18x18xf32>
    %38 = arith.addf %34, %37 : vector<4x18x18xf32>
    %39 = vector.extract_strided_slice %38 {offsets = [0, 0, 0], sizes = [4, 16, 18], strides = [1, 1, 1]} : vector<4x18x18xf32> to vector<4x16x18xf32>
    %40 = vector.extract_strided_slice %38 {offsets = [0, 1, 0], sizes = [4, 16, 18], strides = [1, 1, 1]} : vector<4x18x18xf32> to vector<4x16x18xf32>
    %cst_11 = arith.constant 2.000000e+00 : f32
    %41 = vector.broadcast %cst_11 : f32 to vector<4x16x18xf32>
    %42 = arith.mulf %41, %40 : vector<4x16x18xf32>
    %43 = arith.addf %39, %42 : vector<4x16x18xf32>
    %44 = vector.extract_strided_slice %38 {offsets = [0, 2, 0], sizes = [4, 16, 18], strides = [1, 1, 1]} : vector<4x18x18xf32> to vector<4x16x18xf32>
    %45 = arith.addf %43, %44 : vector<4x16x18xf32>
    %46 = vector.extract_strided_slice %45 {offsets = [0, 0, 2], sizes = [4, 16, 16], strides = [1, 1, 1]} : vector<4x16x18xf32> to vector<4x16x16xf32>
    %47 = vector.extract_strided_slice %45 {offsets = [0, 0, 0], sizes = [4, 16, 16], strides = [1, 1, 1]} : vector<4x16x18xf32> to vector<4x16x16xf32>
    %48 = arith.subf %46, %47 : vector<4x16x16xf32>
    %49 = vector.extract_strided_slice %38 {offsets = [0, 0, 0], sizes = [4, 18, 16], strides = [1, 1, 1]} : vector<4x18x18xf32> to vector<4x18x16xf32>
    %50 = vector.extract_strided_slice %38 {offsets = [0, 0, 1], sizes = [4, 18, 16], strides = [1, 1, 1]} : vector<4x18x18xf32> to vector<4x18x16xf32>
    %cst_12 = arith.constant 2.000000e+00 : f32
    %51 = vector.broadcast %cst_12 : f32 to vector<4x18x16xf32>
    %52 = arith.mulf %51, %50 : vector<4x18x16xf32>
    %53 = arith.addf %49, %52 : vector<4x18x16xf32>
    %54 = vector.extract_strided_slice %38 {offsets = [0, 0, 2], sizes = [4, 18, 16], strides = [1, 1, 1]} : vector<4x18x18xf32> to vector<4x18x16xf32>
    %55 = arith.addf %53, %54 : vector<4x18x16xf32>
    %56 = vector.extract_strided_slice %55 {offsets = [0, 0, 0], sizes = [4, 16, 16], strides = [1, 1, 1]} : vector<4x18x16xf32> to vector<4x16x16xf32>
    %57 = vector.extract_strided_slice %55 {offsets = [0, 2, 0], sizes = [4, 16, 16], strides = [1, 1, 1]} : vector<4x18x16xf32> to vector<4x16x16xf32>
    %58 = arith.subf %56, %57 : vector<4x16x16xf32>
    %59 = arith.mulf %48, %48 : vector<4x16x16xf32>
    %60 = arith.mulf %58, %58 : vector<4x16x16xf32>
    %61 = arith.addf %59, %60 : vector<4x16x16xf32>
    %62 = vector.extract_strided_slice %61 {offsets = [0, 1, 1], sizes = [4, 14, 14], strides = [1, 1, 1]} : vector<4x16x16xf32> to vector<4x14x14xf32>
    %63 = vector.extract_strided_slice %48 {offsets = [0, 1, 1], sizes = [4, 14, 14], strides = [1, 1, 1]} : vector<4x16x16xf32> to vector<4x14x14xf32>
    %64 = vector.extract_strided_slice %58 {offsets = [0, 1, 1], sizes = [4, 14, 14], strides = [1, 1, 1]} : vector<4x16x16xf32> to vector<4x14x14xf32>
    %65 = math.absf %63 : vector<4x14x14xf32>
    %66 = math.absf %64 : vector<4x14x14xf32>
    %cst_13 = arith.constant 0.414213568 : f32
    %67 = vector.broadcast %cst_13 : f32 to vector<4x14x14xf32>
    %68 = arith.mulf %67, %65 : vector<4x14x14xf32>
    %69 = arith.cmpf olt, %66, %68 : vector<4x14x14xf32>
    %cst_14 = arith.constant 2.41421366 : f32
    %70 = vector.broadcast %cst_14 : f32 to vector<4x14x14xf32>
    %71 = arith.mulf %70, %65 : vector<4x14x14xf32>
    %72 = arith.cmpf oge, %66, %71 : vector<4x14x14xf32>
    %73 = arith.mulf %63, %64 : vector<4x14x14xf32>
    %cst_15 = arith.constant 0.000000e+00 : f32
    %74 = vector.broadcast %cst_15 : f32 to vector<4x14x14xf32>
    %75 = arith.cmpf ogt, %73, %74 : vector<4x14x14xf32>
    %76 = vector.extract_strided_slice %61 {offsets = [0, 1, 2], sizes = [4, 14, 14], strides = [1, 1, 1]} : vector<4x16x16xf32> to vector<4x14x14xf32>
    %77 = vector.extract_strided_slice %61 {offsets = [0, 2, 1], sizes = [4, 14, 14], strides = [1, 1, 1]} : vector<4x16x16xf32> to vector<4x14x14xf32>
    %78 = vector.extract_strided_slice %61 {offsets = [0, 2, 0], sizes = [4, 14, 14], strides = [1, 1, 1]} : vector<4x16x16xf32> to vector<4x14x14xf32>
    %79 = vector.extract_strided_slice %61 {offsets = [0, 0, 0], sizes = [4, 14, 14], strides = [1, 1, 1]} : vector<4x16x16xf32> to vector<4x14x14xf32>
    %80 = arith.select %75, %78, %79 : vector<4x14x14xi1>, vector<4x14x14xf32>
    %81 = arith.select %72, %77, %80 : vector<4x14x14xi1>, vector<4x14x14xf32>
    %82 = arith.select %69, %76, %81 : vector<4x14x14xi1>, vector<4x14x14xf32>
    %83 = vector.extract_strided_slice %61 {offsets = [0, 1, 0], sizes = [4, 14, 14], strides = [1, 1, 1]} : vector<4x16x16xf32> to vector<4x14x14xf32>
    %84 = vector.extract_strided_slice %61 {offsets = [0, 0, 1], sizes = [4, 14, 14], strides = [1, 1, 1]} : vector<4x16x16xf32> to vector<4x14x14xf32>
    %85 = vector.extract_strided_slice %61 {offsets = [0, 0, 2], sizes = [4, 14, 14], strides = [1, 1, 1]} : vector<4x16x16xf32> to vector<4x14x14xf32>
    %86 = vector.extract_strided_slice %61 {offsets = [0, 2, 2], sizes = [4, 14, 14], strides = [1, 1, 1]} : vector<4x16x16xf32> to vector<4x14x14xf32>
    %87 = arith.select %75, %85, %86 : vector<4x14x14xi1>, vector<4x14x14xf32>
    %88 = arith.select %72, %84, %87 : vector<4x14x14xi1>, vector<4x14x14xf32>
    %89 = arith.select %69, %83, %88 : vector<4x14x14xi1>, vector<4x14x14xf32>
    %90 = arith.cmpf oge, %62, %82 : vector<4x14x14xf32>
    %91 = arith.cmpf oge, %62, %89 : vector<4x14x14xf32>
    %92 = arith.andi %90, %91 : vector<4x14x14xi1>
    %cst_16 = arith.constant 0.000000e+00 : f32
    %93 = vector.broadcast %cst_16 : f32 to vector<4x14x14xf32>
    %94 = arith.select %92, %62, %93 : vector<4x14x14xi1>, vector<4x14x14xf32>
    %cst_17 = arith.constant dense<0xFF800000> : vector<4x14xf32>
    %95 = vector.multi_reduction <maximumf>, %94, %cst_17 [2] : vector<4x14x14xf32> to vector<4x14xf32>
    %96 = vector.shape_cast %95 : vector<4x14xf32> to vector<4x14x1xf32>
    %cst_18 = arith.constant dense<0xFF800000> : vector<4x1xf32>
    %97 = vector.multi_reduction <maximumf>, %96, %cst_18 [1] : vector<4x14x1xf32> to vector<4x1xf32>
    %98 = vector.shape_cast %97 : vector<4x1xf32> to vector<4x1x1xf32>
    %cst_19 = arith.constant 2.250000e-02 : f32
    %99 = vector.broadcast %cst_19 : f32 to vector<4x1x1xf32>
    %100 = arith.mulf %98, %99 : vector<4x1x1xf32>
    %cst_20 = arith.constant 2.500000e-03 : f32
    %101 = vector.broadcast %cst_20 : f32 to vector<4x1x1xf32>
    %102 = arith.mulf %100, %101 : vector<4x1x1xf32>
    %103 = vector.broadcast %100 : vector<4x1x1xf32> to vector<4x14x14xf32>
    %104 = arith.cmpf oge, %94, %103 : vector<4x14x14xf32>
    %105 = vector.broadcast %102 : vector<4x1x1xf32> to vector<4x14x14xf32>
    %106 = arith.cmpf oge, %94, %105 : vector<4x14x14xf32>
    %cst_21 = arith.constant 7.500000e+01 : f32
    %cst_22 = arith.constant 0.000000e+00 : f32
    %107 = vector.broadcast %cst_21 : f32 to vector<4x14x14xf32>
    %108 = vector.broadcast %cst_22 : f32 to vector<4x14x14xf32>
    %109 = arith.select %106, %107, %108 : vector<4x14x14xi1>, vector<4x14x14xf32>
    %cst_23 = arith.constant 2.550000e+02 : f32
    %110 = vector.broadcast %cst_23 : f32 to vector<4x14x14xf32>
    %111 = arith.select %104, %110, %109 : vector<4x14x14xi1>, vector<4x14x14xf32>
    %cst_24 = arith.constant 0.000000e+00 : f32
    %112 = vector.broadcast %cst_24 : f32 to vector<4x16x16xf32>
    %c0_25 = arith.constant 0 : index
    %c0_26 = arith.constant 0 : index
    %c0_27 = arith.constant 0 : index
    %113 = vector.load %arg2[%c0_25, %c0_26, %c0_27] : memref<4x16x16xf32, #tpu.memory_space<vmem>>, vector<4x16x16xf32>
    tpu.vector_store %arg2[%c0_25, %c0_26, %c0_27], %112 {strides = array<i32>} : memref<4x16x16xf32, #tpu.memory_space<vmem>>, vector<4x16x16xf32>,
    %c0_28 = arith.constant 0 : index
    %c1 = arith.constant 1 : index
    %c1_29 = arith.constant 1 : index
    %114 = vector.load %arg2[%c0_28, %c1, %c1_29] : memref<4x16x16xf32, #tpu.memory_space<vmem>>, vector<4x14x14xf32>
    tpu.vector_store %arg2[%c0_28, %c1, %c1_29], %111 {strides = array<i32>} : memref<4x16x16xf32, #tpu.memory_space<vmem>>, vector<4x14x14xf32>,
    return
  }
  func.func @transform_0(%arg0: i32) -> (i32, i32, i32) {
    %c0_i32 = arith.constant 0 : i32
    %c0_i32_0 = arith.constant 0 : i32
    %c0_i32_1 = arith.constant 0 : i32
    return %arg0, %c0_i32, %c0_i32_0 : i32, i32, i32
  }
  func.func @transform_1(%arg0: i32) -> (i32, i32, i32) {
    %c0_i32 = arith.constant 0 : i32
    %c0_i32_0 = arith.constant 0 : i32
    %c0_i32_1 = arith.constant 0 : i32
    return %arg0, %c0_i32, %c0_i32_0 : i32, i32, i32
  }
}

</mosaic_0001>

<llo_original>
// kernel: tpu_custom_call.1
$region0: #{tpu_custom_call.1}
  #allocation0 [shape = 'u32[]', space=smem, size = 0x4, offset = 0x4, fixed_abs, tag = 'smem constant byte address 0x4 - core index']
  #allocation1 [shape = 'u32[144,128]{1,0:T(1,128)}', space=vmem, size = 0x12000, scoped, tag = 'internal scratch']
  %s0 = inlined_call_operand.vmem [shape: f32[8,22,22], index: 0, kind: input, shape index: {}]
  %s1 = inlined_call_operand.hbm [shape: f32[8,16,16], index: 1, kind: output, shape index: {}]
  %s2 = sld [smem:[#allocation0]]
  $region37: #{tpu_custom_call.1} parent=0
    _
  %s4 = ssub.s32 1, %s2
  %s5 = scalar_select 0, %s4, %s2
  $region1: #{tpu_custom_call.1} parent=0
    #allocation2 [shape = 'u8[65536]{0}', space=vmem, size = 0x10000, scoped, tag = 'output window, operand 0']
    #allocation3 [shape = 's32[2]{0}', space=sflag, size = 0x8, scoped, tag = 'scoped memory for tpu_custom_call.1']
    %6 = vsyncpa [#allocation3], 0
    %s7 = scalar_lea.sflag [#allocation3], 1
    %8 = vsyncpa %s7, 0
    loop: start=0, step=1, limit=4
    $region2: #{tpu_custom_call.1} parent=1 // loop_pre_header
      _
    $region3: #{tpu_custom_call.1} parent=1 // loop_header
      %s10 = sphi 0, %s14
      %p11 = scmp.ge.s32.totalorder %s10, 4
      %s20 = sphi 0, %s22
      %s23 = sphi 0, %s20
      %s24 = sphi 0, %s23
      %s40 = sphi 0, %s24
      %s46 = sphi 0, %s48
      %s49 = sphi 0, %s46
      %s50 = sphi 0, %s49
      %s66 = sphi 0, %s50
    $region4: #{tpu_custom_call.1} parent=1 // loop_header_branch
      %13 = sbr.rel (%p11) target = $region8
    $region5: #{tpu_custom_call.1} parent=1 // loop_body
      %s15 = ssub.s32 %s10, 1
      %s16 = ssub.s32 %s10, 2
      %s17 = sadd.s32 %s10, 1
      %s18 = ssub.s32 %s10, %s17
      %p19 = scmp.eq.s32.totalorder %s18, 0
      %s21 = sadd.s32 %s20, 1
      %s22 = scalar_select %p19, %s20, %s21
      %p25 = pneg %p19
      %p26 = scmp.eq.s32.totalorder %s10, 1
      %p27 = por %p25, %p26
      %p28 = scmp.ne.s32.totalorder %s20, %s23
      %p29 = scmp.eq.s32.totalorder %s10, 0
      %p30 = por %p28, %p29
      %p31 = scmp.ne.s32.totalorder %s20, %s23
      %p32 = scmp.eq.s32.totalorder %s15, 1
      %p33 = por %p31, %p32
      %p34 = scmp.ne.s32.totalorder %s23, %s24
      %p35 = scmp.eq.s32.totalorder %s15, 0
      %p36 = por %p34, %p35
      %p37 = scmp.ne.s32.totalorder %s23, %s24
      %p38 = scmp.eq.s32.totalorder %s16, 1
      %p39 = por %p37, %p38
      %p41 = scmp.ne.s32.totalorder %s24, %s40
      %p42 = scmp.eq.s32.totalorder %s16, 0
      %p43 = por %p41, %p42
      %s44 = ssub.s32 %s10, %s17
      %p45 = scmp.eq.s32.totalorder %s44, 0
      %s47 = sadd.s32 %s46, 1
      %s48 = scalar_select %p45, %s46, %s47
      %p51 = pneg %p45
      %p52 = scmp.eq.s32.totalorder %s10, 1
      %p53 = por %p51, %p52
      %p54 = scmp.ne.s32.totalorder %s46, %s49
      %p55 = scmp.eq.s32.totalorder %s10, 0
      %p56 = por %p54, %p55
      %p57 = scmp.ne.s32.totalorder %s46, %s49
      %p58 = scmp.eq.s32.totalorder %s15, 1
      %p59 = por %p57, %p58
      %p60 = scmp.ne.s32.totalorder %s49, %s50
      %p61 = scmp.eq.s32.totalorder %s15, 0
      %p62 = por %p60, %p61
      %p63 = scmp.ne.s32.totalorder %s49, %s50
      %p64 = scmp.eq.s32.totalorder %s16, 1
      %p65 = por %p63, %p64
      %p67 = scmp.ne.s32.totalorder %s50, %s66
      %p68 = scmp.eq.s32.totalorder %s16, 0
      %p69 = por %p67, %p68
      %p70 = scmp.le.s32.totalorder 1, %s10
      %p71 = scmp.lt.s32.totalorder %s10, 3
      %p72 = pnand %p70, %p71
      %p73 = pneg %p72
      // Predicated region
      $region9: #{tpu_custom_call.1} parent=5 // pred_check
        _
      $region10: #{tpu_custom_call.1} parent=5 // pred_check_branch
        %75 = sbr.rel (%p72) target = $region12
      $region11: #{tpu_custom_call.1} parent=5 // pred_region
        %s76 = ssub.s32 %s10, 1
      $region12: #{tpu_custom_call.1} parent=5 // pred_fallthru
        _
      %p77 = scmp.lt.s32.totalorder %s10, 2
      // Predicated region
      $region13: #{tpu_custom_call.1} parent=5 // pred_check
        %p78 = pneg %p77
      $region14: #{tpu_custom_call.1} parent=5 // pred_check_branch
        %80 = sbr.rel (%p78) target = $region16
      $region15: #{tpu_custom_call.1} parent=5 // pred_region
        // Predicated region
        $region17: #{tpu_custom_call.1} parent=15 // pred_check
          %p81 = pneg %p30
        $region18: #{tpu_custom_call.1} parent=15 // pred_check_branch
          %83 = sbr.rel (%p81) target = $region20
        $region19: #{tpu_custom_call.1} parent=15 // pred_region
          %s84 = smul.u32 4, %s10
          %p85 = scmp.lt.s32.totalorder %s84, 7
          %s86 = scalar_select %p85, %s84, 7
          %s87 = smul.addr %s86, 3
          %s88 = smul.addr %s87, 8
          %s89 = scalar_lea.vmem %s0, %s88
          %s90 = smul.u32 4, %s10
        $region20: #{tpu_custom_call.1} parent=15 // pred_fallthru
          _
      $region16: #{tpu_custom_call.1} parent=5 // pred_fallthru
        _
      %p91 = scmp.le.s32.totalorder 1, %s10
      %p92 = scmp.lt.s32.totalorder %s10, 3
      %p93 = pnand %p91, %p92
      %p94 = pneg %p93
      // Predicated region
      $region21: #{tpu_custom_call.1} parent=5 // pred_check
        _
      $region22: #{tpu_custom_call.1} parent=5 // pred_check_branch
        %96 = sbr.rel (%p93) target = $region24
      $region23: #{tpu_custom_call.1} parent=5 // pred_region
        %s97 = ssub.s32 %s10, 1
        %s98 = smul.u32 4, %s15
        %p99 = scmp.lt.s32.totalorder %s98, 7
        %s100 = scalar_select %p99, %s98, 7
        %s101 = smul.addr %s100, 3
        %s102 = smul.addr %s101, 8
        %s103 = scalar_lea.vmem %s0, %s102
        %p104 = pneg %p36
        %p105 = pneg %p33
        %p106 = pneg %p62
        %p107 = pneg %p59
        %s108 = sand.u32 %s49, 1
        %s109 = scalar_lea.sflag [#allocation3], %s108
        %s110 = sand.u32 %s49, 1
        %s111 = smul.addr %s110, 64
        %s112 = scalar_lea.vmem [#allocation2], %s111
        %s113 = smul.u32 4, %s15
        %p114 = scmp.lt.s32.totalorder %s113, 7
        %s115 = scalar_select %p114, %s113, 7
        %s116 = smul.addr %s115, 3
        %s117 = smul.addr %s116, 8
        %s118 = scalar_lea.vmem %s0, %s117
        %s119 = smul.u32 4, %s15
        %s120 = smul.u32 4, %s15
        %v121 = vld [vmem:[%s118] sm:$0xff]
        %v122 = vld [vmem:[%s118 + $0x8] sm:$0xff]
        %v123 = vld [vmem:[%s118 + $0x10] sm:$0x3f]
        %v124 = vld [vmem:[%s118 + $0x18] sm:$0xff]
        %v125 = vld [vmem:[%s118 + $0x20] sm:$0xff]
        %v126 = vld [vmem:[%s118 + $0x28] sm:$0x3f]
        %v127 = vld [vmem:[%s118 + $0x30] sm:$0xff]
        %v128 = vld [vmem:[%s118 + $0x38] sm:$0xff]
        %v129 = vld [vmem:[%s118 + $0x40] sm:$0x3f]
        %v130 = vld [vmem:[%s118 + $0x48] sm:$0xff]
        %v131 = vld [vmem:[%s118 + $0x50] sm:$0xff]
        %v132 = vld [vmem:[%s118 + $0x58] sm:$0x3f]
        %v133 = vmul.f32 %v121, 0.054488685
        %v134 = vmul.f32 %v122, 0.054488685
        %v135 = vmul.f32 %v123, 0.054488685
        %v136 = vmul.f32 %v124, 0.054488685
        %v137 = vmul.f32 %v125, 0.054488685
        %v138 = vmul.f32 %v126, 0.054488685
        %v139 = vmul.f32 %v127, 0.054488685
        %v140 = vmul.f32 %v128, 0.054488685
        %v141 = vmul.f32 %v129, 0.054488685
        %v142 = vmul.f32 %v130, 0.054488685
        %v143 = vmul.f32 %v131, 0.054488685
        %v144 = vmul.f32 %v132, 0.054488685
        %v145 = vmul.f32 %v121, 0.24420135
        %v146 = vmul.f32 %v122, 0.24420135
        %v147 = vmul.f32 %v123, 0.24420135
        %v148 = vmul.f32 %v124, 0.24420135
        %v149 = vmul.f32 %v125, 0.24420135
        %v150 = vmul.f32 %v126, 0.24420135
        %v151 = vmul.f32 %v127, 0.24420135
        %v152 = vmul.f32 %v128, 0.24420135
        %v153 = vmul.f32 %v129, 0.24420135
        %v154 = vmul.f32 %v130, 0.24420135
        %v155 = vmul.f32 %v131, 0.24420135
        %v156 = vmul.f32 %v132, 0.24420135
        %169 = vrot.lane.b32.xlu0 %v145, 127
        %v170 = vpop.permute.xlu0 %169
        %171 = vrot.lane.b32.xlu0 %v146, 127
        %v172 = vpop.permute.xlu0 %171
        %173 = vrot.lane.b32.xlu0 %v147, 127
        %v174 = vpop.permute.xlu0 %173
        %175 = vrot.lane.b32.xlu0 %v148, 127
        %v176 = vpop.permute.xlu0 %175
        %177 = vrot.lane.b32.xlu0 %v149, 127
        %v178 = vpop.permute.xlu0 %177
        %179 = vrot.lane.b32.xlu0 %v150, 127
        %v180 = vpop.permute.xlu0 %179
        %181 = vrot.lane.b32.xlu0 %v151, 127
        %v182 = vpop.permute.xlu0 %181
        %183 = vrot.lane.b32.xlu0 %v152, 127
        %v184 = vpop.permute.xlu0 %183
        %185 = vrot.lane.b32.xlu0 %v153, 127
        %v186 = vpop.permute.xlu0 %185
        %187 = vrot.lane.b32.xlu0 %v154, 127
        %v188 = vpop.permute.xlu0 %187
        %189 = vrot.lane.b32.xlu0 %v155, 127
        %v190 = vpop.permute.xlu0 %189
        %191 = vrot.lane.b32.xlu0 %v156, 127
        %v192 = vpop.permute.xlu0 %191
        %v205 = vadd.f32 %v133, %v170
        %v206 = vadd.f32 %v134, %v172
        %v207 = vadd.f32 %v135, %v174
        %v208 = vadd.f32 %v136, %v176
        %v209 = vadd.f32 %v137, %v178
        %v210 = vadd.f32 %v138, %v180
        %v211 = vadd.f32 %v139, %v182
        %v212 = vadd.f32 %v140, %v184
        %v213 = vadd.f32 %v141, %v186
        %v214 = vadd.f32 %v142, %v188
        %v215 = vadd.f32 %v143, %v190
        %v216 = vadd.f32 %v144, %v192
        %v217 = vmul.f32 %v121, 0.40261996
        %v218 = vmul.f32 %v122, 0.40261996
        %v219 = vmul.f32 %v123, 0.40261996
        %v220 = vmul.f32 %v124, 0.40261996
        %v221 = vmul.f32 %v125, 0.40261996
        %v222 = vmul.f32 %v126, 0.40261996
        %v223 = vmul.f32 %v127, 0.40261996
        %v224 = vmul.f32 %v128, 0.40261996
        %v225 = vmul.f32 %v129, 0.40261996
        %v226 = vmul.f32 %v130, 0.40261996
        %v227 = vmul.f32 %v131, 0.40261996
        %v228 = vmul.f32 %v132, 0.40261996
        %241 = vrot.lane.b32.xlu0 %v217, 126
        %v242 = vpop.permute.xlu0 %241
        %243 = vrot.lane.b32.xlu0 %v218, 126
        %v244 = vpop.permute.xlu0 %243
        %245 = vrot.lane.b32.xlu0 %v219, 126
        %v246 = vpop.permute.xlu0 %245
        %247 = vrot.lane.b32.xlu0 %v220, 126
        %v248 = vpop.permute.xlu0 %247
        %249 = vrot.lane.b32.xlu0 %v221, 126
        %v250 = vpop.permute.xlu0 %249
        %251 = vrot.lane.b32.xlu0 %v222, 126
        %v252 = vpop.permute.xlu0 %251
        %253 = vrot.lane.b32.xlu0 %v223, 126
        %v254 = vpop.permute.xlu0 %253
        %255 = vrot.lane.b32.xlu0 %v224, 126
        %v256 = vpop.permute.xlu0 %255
        %257 = vrot.lane.b32.xlu0 %v225, 126
        %v258 = vpop.permute.xlu0 %257
        %259 = vrot.lane.b32.xlu0 %v226, 126
        %v260 = vpop.permute.xlu0 %259
        %261 = vrot.lane.b32.xlu0 %v227, 126
        %v262 = vpop.permute.xlu0 %261
        %263 = vrot.lane.b32.xlu0 %v228, 126
        %v264 = vpop.permute.xlu0 %263
        %v277 = vadd.f32 %v205, %v242
        %v278 = vadd.f32 %v206, %v244
        %v279 = vadd.f32 %v207, %v246
        %v280 = vadd.f32 %v208, %v248
        %v281 = vadd.f32 %v209, %v250
        %v282 = vadd.f32 %v210, %v252
        %v283 = vadd.f32 %v211, %v254
        %v284 = vadd.f32 %v212, %v256
        %v285 = vadd.f32 %v213, %v258
        %v286 = vadd.f32 %v214, %v260
        %v287 = vadd.f32 %v215, %v262
        %v288 = vadd.f32 %v216, %v264
        %289 = vrot.lane.b32.xlu0 %v145, 125
        %v290 = vpop.permute.xlu0 %289
        %291 = vrot.lane.b32.xlu0 %v146, 125
        %v292 = vpop.permute.xlu0 %291
        %293 = vrot.lane.b32.xlu0 %v147, 125
        %v294 = vpop.permute.xlu0 %293
        %295 = vrot.lane.b32.xlu0 %v148, 125
        %v296 = vpop.permute.xlu0 %295
        %297 = vrot.lane.b32.xlu0 %v149, 125
        %v298 = vpop.permute.xlu0 %297
        %299 = vrot.lane.b32.xlu0 %v150, 125
        %v300 = vpop.permute.xlu0 %299
        %301 = vrot.lane.b32.xlu0 %v151, 125
        %v302 = vpop.permute.xlu0 %301
        %303 = vrot.lane.b32.xlu0 %v152, 125
        %v304 = vpop.permute.xlu0 %303
        %305 = vrot.lane.b32.xlu0 %v153, 125
        %v306 = vpop.permute.xlu0 %305
        %307 = vrot.lane.b32.xlu0 %v154, 125
        %v308 = vpop.permute.xlu0 %307
        %309 = vrot.lane.b32.xlu0 %v155, 125
        %v310 = vpop.permute.xlu0 %309
        %311 = vrot.lane.b32.xlu0 %v156, 125
        %v312 = vpop.permute.xlu0 %311
        %v325 = vadd.f32 %v277, %v290
        %v326 = vadd.f32 %v278, %v292
        %v327 = vadd.f32 %v279, %v294
        %v328 = vadd.f32 %v280, %v296
        %v329 = vadd.f32 %v281, %v298
        %v330 = vadd.f32 %v282, %v300
        %v331 = vadd.f32 %v283, %v302
        %v332 = vadd.f32 %v284, %v304
        %v333 = vadd.f32 %v285, %v306
        %v334 = vadd.f32 %v286, %v308
        %v335 = vadd.f32 %v287, %v310
        %v336 = vadd.f32 %v288, %v312
        %349 = vrot.lane.b32.xlu0 %v133, 124
        %v350 = vpop.permute.xlu0 %349
        %351 = vrot.lane.b32.xlu0 %v134, 124
        %v352 = vpop.permute.xlu0 %351
        %353 = vrot.lane.b32.xlu0 %v135, 124
        %v354 = vpop.permute.xlu0 %353
        %355 = vrot.lane.b32.xlu0 %v136, 124
        %v356 = vpop.permute.xlu0 %355
        %357 = vrot.lane.b32.xlu0 %v137, 124
        %v358 = vpop.permute.xlu0 %357
        %359 = vrot.lane.b32.xlu0 %v138, 124
        %v360 = vpop.permute.xlu0 %359
        %361 = vrot.lane.b32.xlu0 %v139, 124
        %v362 = vpop.permute.xlu0 %361
        %363 = vrot.lane.b32.xlu0 %v140, 124
        %v364 = vpop.permute.xlu0 %363
        %365 = vrot.lane.b32.xlu0 %v141, 124
        %v366 = vpop.permute.xlu0 %365
        %367 = vrot.lane.b32.xlu0 %v142, 124
        %v368 = vpop.permute.xlu0 %367
        %369 = vrot.lane.b32.xlu0 %v143, 124
        %v370 = vpop.permute.xlu0 %369
        %371 = vrot.lane.b32.xlu0 %v144, 124
        %v372 = vpop.permute.xlu0 %371
        %v385 = vadd.f32 %v325, %v350
        %v386 = vadd.f32 %v326, %v352
        %v387 = vadd.f32 %v327, %v354
        %v388 = vadd.f32 %v328, %v356
        %v389 = vadd.f32 %v329, %v358
        %v390 = vadd.f32 %v330, %v360
        %v391 = vadd.f32 %v331, %v362
        %v392 = vadd.f32 %v332, %v364
        %v393 = vadd.f32 %v333, %v366
        %v394 = vadd.f32 %v334, %v368
        %v395 = vadd.f32 %v335, %v370
        %v396 = vadd.f32 %v336, %v372
        %v397 = vmul.f32 %v385, 0.054488685
        %v398 = vmul.f32 %v386, 0.054488685
        %v399 = vmul.f32 %v387, 0.054488685
        %v400 = vmul.f32 %v388, 0.054488685
        %v401 = vmul.f32 %v389, 0.054488685
        %v402 = vmul.f32 %v390, 0.054488685
        %v403 = vmul.f32 %v391, 0.054488685
        %v404 = vmul.f32 %v392, 0.054488685
        %v405 = vmul.f32 %v393, 0.054488685
        %v406 = vmul.f32 %v394, 0.054488685
        %v407 = vmul.f32 %v395, 0.054488685
        %v408 = vmul.f32 %v396, 0.054488685
        %v409 = vmul.f32 %v385, 0.24420135
        %v410 = vmul.f32 %v386, 0.24420135
        %v411 = vmul.f32 %v387, 0.24420135
        %v412 = vmul.f32 %v388, 0.24420135
        %v413 = vmul.f32 %v389, 0.24420135
        %v414 = vmul.f32 %v390, 0.24420135
        %v415 = vmul.f32 %v391, 0.24420135
        %v416 = vmul.f32 %v392, 0.24420135
        %v417 = vmul.f32 %v393, 0.24420135
        %v418 = vmul.f32 %v394, 0.24420135
        %v419 = vmul.f32 %v395, 0.24420135
        %v420 = vmul.f32 %v396, 0.24420135
        %vm433 = vcmask 1046528
        %v434 = vrot.slane %v409, 1
        %v435 = vrot.slane %v410, 1
        %v436 = vsel %vm433, %v434, %v435
        %v437 = vrot.slane %v411, 1
        %v438 = vsel %vm433, %v435, %v437
        %v439 = vrot.slane %v412, 1
        %v440 = vrot.slane %v413, 1
        %v441 = vsel %vm433, %v439, %v440
        %v442 = vrot.slane %v414, 1
        %v443 = vsel %vm433, %v440, %v442
        %v444 = vrot.slane %v415, 1
        %v445 = vrot.slane %v416, 1
        %v446 = vsel %vm433, %v444, %v445
        %v447 = vrot.slane %v417, 1
        %v448 = vsel %vm433, %v445, %v447
        %v449 = vrot.slane %v418, 1
        %v450 = vrot.slane %v419, 1
        %v451 = vsel %vm433, %v449, %v450
        %v452 = vrot.slane %v420, 1
        %v453 = vsel %vm433, %v450, %v452
        %v466 = vadd.f32 %v397, %v436
        %v467 = vadd.f32 %v398, %v438
        %v468 = vadd.f32 %v399, %v437
        %v469 = vadd.f32 %v400, %v441
        %v470 = vadd.f32 %v401, %v443
        %v471 = vadd.f32 %v402, %v442
        %v472 = vadd.f32 %v403, %v446
        %v473 = vadd.f32 %v404, %v448
        %v474 = vadd.f32 %v405, %v447
        %v475 = vadd.f32 %v406, %v451
        %v476 = vadd.f32 %v407, %v453
        %v477 = vadd.f32 %v408, %v452
        %v478 = vmul.f32 %v385, 0.40261996
        %v479 = vmul.f32 %v386, 0.40261996
        %v480 = vmul.f32 %v387, 0.40261996
        %v481 = vmul.f32 %v388, 0.40261996
        %v482 = vmul.f32 %v389, 0.40261996
        %v483 = vmul.f32 %v390, 0.40261996
        %v484 = vmul.f32 %v391, 0.40261996
        %v485 = vmul.f32 %v392, 0.40261996
        %v486 = vmul.f32 %v393, 0.40261996
        %v487 = vmul.f32 %v394, 0.40261996
        %v488 = vmul.f32 %v395, 0.40261996
        %v489 = vmul.f32 %v396, 0.40261996
        %vm502 = vcmask 1045504
        %v503 = vrot.slane %v478, 2
        %v504 = vrot.slane %v479, 2
        %v505 = vsel %vm502, %v503, %v504
        %v506 = vrot.slane %v480, 2
        %v507 = vsel %vm502, %v504, %v506
        %v508 = vrot.slane %v481, 2
        %v509 = vrot.slane %v482, 2
        %v510 = vsel %vm502, %v508, %v509
        %v511 = vrot.slane %v483, 2
        %v512 = vsel %vm502, %v509, %v511
        %v513 = vrot.slane %v484, 2
        %v514 = vrot.slane %v485, 2
        %v515 = vsel %vm502, %v513, %v514
        %v516 = vrot.slane %v486, 2
        %v517 = vsel %vm502, %v514, %v516
        %v518 = vrot.slane %v487, 2
        %v519 = vrot.slane %v488, 2
        %v520 = vsel %vm502, %v518, %v519
        %v521 = vrot.slane %v489, 2
        %v522 = vsel %vm502, %v519, %v521
        %v535 = vadd.f32 %v466, %v505
        %v536 = vadd.f32 %v467, %v507
        %v537 = vadd.f32 %v468, %v506
        %v538 = vadd.f32 %v469, %v510
        %v539 = vadd.f32 %v470, %v512
        %v540 = vadd.f32 %v471, %v511
        %v541 = vadd.f32 %v472, %v515
        %v542 = vadd.f32 %v473, %v517
        %v543 = vadd.f32 %v474, %v516
        %v544 = vadd.f32 %v475, %v520
        %v545 = vadd.f32 %v476, %v522
        %v546 = vadd.f32 %v477, %v521
        %vm547 = vcmask 1044480
        %v548 = vrot.slane %v409, 3
        %v549 = vrot.slane %v410, 3
        %v550 = vsel %vm547, %v548, %v549
        %v551 = vrot.slane %v411, 3
        %v552 = vsel %vm547, %v549, %v551
        %v553 = vrot.slane %v412, 3
        %v554 = vrot.slane %v413, 3
        %v555 = vsel %vm547, %v553, %v554
        %v556 = vrot.slane %v414, 3
        %v557 = vsel %vm547, %v554, %v556
        %v558 = vrot.slane %v415, 3
        %v559 = vrot.slane %v416, 3
        %v560 = vsel %vm547, %v558, %v559
        %v561 = vrot.slane %v417, 3
        %v562 = vsel %vm547, %v559, %v561
        %v563 = vrot.slane %v418, 3
        %v564 = vrot.slane %v419, 3
        %v565 = vsel %vm547, %v563, %v564
        %v566 = vrot.slane %v420, 3
        %v567 = vsel %vm547, %v564, %v566
        %v580 = vadd.f32 %v535, %v550
        %v581 = vadd.f32 %v536, %v552
        %v582 = vadd.f32 %v537, %v551
        %v583 = vadd.f32 %v538, %v555
        %v584 = vadd.f32 %v539, %v557
        %v585 = vadd.f32 %v540, %v556
        %v586 = vadd.f32 %v541, %v560
        %v587 = vadd.f32 %v542, %v562
        %v588 = vadd.f32 %v543, %v561
        %v589 = vadd.f32 %v544, %v565
        %v590 = vadd.f32 %v545, %v567
        %v591 = vadd.f32 %v546, %v566
        %vm604 = vcmask 1043456
        %v605 = vrot.slane %v397, 4
        %v606 = vrot.slane %v398, 4
        %v607 = vsel %vm604, %v605, %v606
        %v608 = vrot.slane %v399, 4
        %v609 = vsel %vm604, %v606, %v608
        %v610 = vrot.slane %v400, 4
        %v611 = vrot.slane %v401, 4
        %v612 = vsel %vm604, %v610, %v611
        %v613 = vrot.slane %v402, 4
        %v614 = vsel %vm604, %v611, %v613
        %v615 = vrot.slane %v403, 4
        %v616 = vrot.slane %v404, 4
        %v617 = vsel %vm604, %v615, %v616
        %v618 = vrot.slane %v405, 4
        %v619 = vsel %vm604, %v616, %v618
        %v620 = vrot.slane %v406, 4
        %v621 = vrot.slane %v407, 4
        %v622 = vsel %vm604, %v620, %v621
        %v623 = vrot.slane %v408, 4
        %v624 = vsel %vm604, %v621, %v623
        %v637 = vadd.f32 %v580, %v607
        %v638 = vadd.f32 %v581, %v609
        %v639 = vadd.f32 %v582, %v608
        %v640 = vadd.f32 %v583, %v612
        %v641 = vadd.f32 %v584, %v614
        %v642 = vadd.f32 %v585, %v613
        %v643 = vadd.f32 %v586, %v617
        %v644 = vadd.f32 %v587, %v619
        %v645 = vadd.f32 %v588, %v618
        %v646 = vadd.f32 %v589, %v622
        %v647 = vadd.f32 %v590, %v624
        %v648 = vadd.f32 %v591, %v623
        %v649 = vmul.f32 %v637, 2.0
        %v650 = vmul.f32 %v638, 2.0
        %v651 = vmul.f32 %v639, 2.0
        %v652 = vmul.f32 %v640, 2.0
        %v653 = vmul.f32 %v641, 2.0
        %v654 = vmul.f32 %v642, 2.0
        %v655 = vmul.f32 %v643, 2.0
        %v656 = vmul.f32 %v644, 2.0
        %v657 = vmul.f32 %v645, 2.0
        %v658 = vmul.f32 %v646, 2.0
        %v659 = vmul.f32 %v647, 2.0
        %v660 = vmul.f32 %v648, 2.0
        %v673 = vrot.slane %v649, 1
        %v674 = vrot.slane %v650, 1
        %v675 = vsel %vm433, %v673, %v674
        %v676 = vrot.slane %v651, 1
        %v677 = vsel %vm433, %v674, %v676
        %v678 = vrot.slane %v652, 1
        %v679 = vrot.slane %v653, 1
        %v680 = vsel %vm433, %v678, %v679
        %v681 = vrot.slane %v654, 1
        %v682 = vsel %vm433, %v679, %v681
        %v683 = vrot.slane %v655, 1
        %v684 = vrot.slane %v656, 1
        %v685 = vsel %vm433, %v683, %v684
        %v686 = vrot.slane %v657, 1
        %v687 = vsel %vm433, %v684, %v686
        %v688 = vrot.slane %v658, 1
        %v689 = vrot.slane %v659, 1
        %v690 = vsel %vm433, %v688, %v689
        %v691 = vrot.slane %v660, 1
        %v692 = vsel %vm433, %v689, %v691
        %v701 = vadd.f32 %v637, %v675
        %v702 = vadd.f32 %v638, %v677
        %v703 = vadd.f32 %v640, %v680
        %v704 = vadd.f32 %v641, %v682
        %v705 = vadd.f32 %v643, %v685
        %v706 = vadd.f32 %v644, %v687
        %v707 = vadd.f32 %v646, %v690
        %v708 = vadd.f32 %v647, %v692
        %v721 = vrot.slane %v637, 2
        %v722 = vrot.slane %v638, 2
        %v723 = vsel %vm502, %v721, %v722
        %v724 = vrot.slane %v639, 2
        %v725 = vsel %vm502, %v722, %v724
        %v726 = vrot.slane %v640, 2
        %v727 = vrot.slane %v641, 2
        %v728 = vsel %vm502, %v726, %v727
        %v729 = vrot.slane %v642, 2
        %v730 = vsel %vm502, %v727, %v729
        %v731 = vrot.slane %v643, 2
        %v732 = vrot.slane %v644, 2
        %v733 = vsel %vm502, %v731, %v732
        %v734 = vrot.slane %v645, 2
        %v735 = vsel %vm502, %v732, %v734
        %v736 = vrot.slane %v646, 2
        %v737 = vrot.slane %v647, 2
        %v738 = vsel %vm502, %v736, %v737
        %v739 = vrot.slane %v648, 2
        %v740 = vsel %vm502, %v737, %v739
        %v749 = vadd.f32 %v701, %v723
        %v750 = vadd.f32 %v702, %v725
        %v751 = vadd.f32 %v703, %v728
        %v752 = vadd.f32 %v704, %v730
        %v753 = vadd.f32 %v705, %v733
        %v754 = vadd.f32 %v706, %v735
        %v755 = vadd.f32 %v707, %v738
        %v756 = vadd.f32 %v708, %v740
        %765 = vrot.lane.b32.xlu0 %v749, 2
        %v766 = vpop.permute.xlu0 %765
        %767 = vrot.lane.b32.xlu0 %v750, 2
        %v768 = vpop.permute.xlu0 %767
        %769 = vrot.lane.b32.xlu0 %v751, 2
        %v770 = vpop.permute.xlu0 %769
        %771 = vrot.lane.b32.xlu0 %v752, 2
        %v772 = vpop.permute.xlu0 %771
        %773 = vrot.lane.b32.xlu0 %v753, 2
        %v774 = vpop.permute.xlu0 %773
        %775 = vrot.lane.b32.xlu0 %v754, 2
        %v776 = vpop.permute.xlu0 %775
        %777 = vrot.lane.b32.xlu0 %v755, 2
        %v778 = vpop.permute.xlu0 %777
        %779 = vrot.lane.b32.xlu0 %v756, 2
        %v780 = vpop.permute.xlu0 %779
        %v789 = vsub.f32 %v749, %v766
        %v790 = vsub.f32 %v750, %v768
        %v791 = vsub.f32 %v751, %v770
        %v792 = vsub.f32 %v752, %v772
        %v793 = vsub.f32 %v753, %v774
        %v794 = vsub.f32 %v754, %v776
        %v795 = vsub.f32 %v755, %v778
        %v796 = vsub.f32 %v756, %v780
        %797 = vrot.lane.b32.xlu0 %v649, 127
        %v798 = vpop.permute.xlu0 %797
        %799 = vrot.lane.b32.xlu0 %v650, 127
        %v800 = vpop.permute.xlu0 %799
        %801 = vrot.lane.b32.xlu0 %v651, 127
        %v802 = vpop.permute.xlu0 %801
        %803 = vrot.lane.b32.xlu0 %v652, 127
        %v804 = vpop.permute.xlu0 %803
        %805 = vrot.lane.b32.xlu0 %v653, 127
        %v806 = vpop.permute.xlu0 %805
        %807 = vrot.lane.b32.xlu0 %v654, 127
        %v808 = vpop.permute.xlu0 %807
        %809 = vrot.lane.b32.xlu0 %v655, 127
        %v810 = vpop.permute.xlu0 %809
        %811 = vrot.lane.b32.xlu0 %v656, 127
        %v812 = vpop.permute.xlu0 %811
        %813 = vrot.lane.b32.xlu0 %v657, 127
        %v814 = vpop.permute.xlu0 %813
        %815 = vrot.lane.b32.xlu0 %v658, 127
        %v816 = vpop.permute.xlu0 %815
        %817 = vrot.lane.b32.xlu0 %v659, 127
        %v818 = vpop.permute.xlu0 %817
        %819 = vrot.lane.b32.xlu0 %v660, 127
        %v820 = vpop.permute.xlu0 %819
        %v833 = vadd.f32 %v637, %v798
        %v834 = vadd.f32 %v638, %v800
        %v835 = vadd.f32 %v639, %v802
        %v836 = vadd.f32 %v640, %v804
        %v837 = vadd.f32 %v641, %v806
        %v838 = vadd.f32 %v642, %v808
        %v839 = vadd.f32 %v643, %v810
        %v840 = vadd.f32 %v644, %v812
        %v841 = vadd.f32 %v645, %v814
        %v842 = vadd.f32 %v646, %v816
        %v843 = vadd.f32 %v647, %v818
        %v844 = vadd.f32 %v648, %v820
        %845 = vrot.lane.b32.xlu0 %v637, 126
        %v846 = vpop.permute.xlu0 %845
        %847 = vrot.lane.b32.xlu0 %v638, 126
        %v848 = vpop.permute.xlu0 %847
        %849 = vrot.lane.b32.xlu0 %v639, 126
        %v850 = vpop.permute.xlu0 %849
        %851 = vrot.lane.b32.xlu0 %v640, 126
        %v852 = vpop.permute.xlu0 %851
        %853 = vrot.lane.b32.xlu0 %v641, 126
        %v854 = vpop.permute.xlu0 %853
        %855 = vrot.lane.b32.xlu0 %v642, 126
        %v856 = vpop.permute.xlu0 %855
        %857 = vrot.lane.b32.xlu0 %v643, 126
        %v858 = vpop.permute.xlu0 %857
        %859 = vrot.lane.b32.xlu0 %v644, 126
        %v860 = vpop.permute.xlu0 %859
        %861 = vrot.lane.b32.xlu0 %v645, 126
        %v862 = vpop.permute.xlu0 %861
        %863 = vrot.lane.b32.xlu0 %v646, 126
        %v864 = vpop.permute.xlu0 %863
        %865 = vrot.lane.b32.xlu0 %v647, 126
        %v866 = vpop.permute.xlu0 %865
        %867 = vrot.lane.b32.xlu0 %v648, 126
        %v868 = vpop.permute.xlu0 %867
        %v881 = vadd.f32 %v833, %v846
        %v882 = vadd.f32 %v834, %v848
        %v883 = vadd.f32 %v835, %v850
        %v884 = vadd.f32 %v836, %v852
        %v885 = vadd.f32 %v837, %v854
        %v886 = vadd.f32 %v838, %v856
        %v887 = vadd.f32 %v839, %v858
        %v888 = vadd.f32 %v840, %v860
        %v889 = vadd.f32 %v841, %v862
        %v890 = vadd.f32 %v842, %v864
        %v891 = vadd.f32 %v843, %v866
        %v892 = vadd.f32 %v844, %v868
        %v905 = vrot.slane %v881, 2
        %v906 = vrot.slane %v882, 2
        %v907 = vsel %vm502, %v905, %v906
        %v908 = vrot.slane %v883, 2
        %v909 = vsel %vm502, %v906, %v908
        %v910 = vrot.slane %v884, 2
        %v911 = vrot.slane %v885, 2
        %v912 = vsel %vm502, %v910, %v911
        %v913 = vrot.slane %v886, 2
        %v914 = vsel %vm502, %v911, %v913
        %v915 = vrot.slane %v887, 2
        %v916 = vrot.slane %v888, 2
        %v917 = vsel %vm502, %v915, %v916
        %v918 = vrot.slane %v889, 2
        %v919 = vsel %vm502, %v916, %v918
        %v920 = vrot.slane %v890, 2
        %v921 = vrot.slane %v891, 2
        %v922 = vsel %vm502, %v920, %v921
        %v923 = vrot.slane %v892, 2
        %v924 = vsel %vm502, %v921, %v923
        %v933 = vsub.f32 %v881, %v907
        %v934 = vsub.f32 %v882, %v909
        %v935 = vsub.f32 %v884, %v912
        %v936 = vsub.f32 %v885, %v914
        %v937 = vsub.f32 %v887, %v917
        %v938 = vsub.f32 %v888, %v919
        %v939 = vsub.f32 %v890, %v922
        %v940 = vsub.f32 %v891, %v924
        %v941 = vmul.f32 %v789, %v789
        %v942 = vmul.f32 %v790, %v790
        %v943 = vmul.f32 %v791, %v791
        %v944 = vmul.f32 %v792, %v792
        %v945 = vmul.f32 %v793, %v793
        %v946 = vmul.f32 %v794, %v794
        %v947 = vmul.f32 %v795, %v795
        %v948 = vmul.f32 %v796, %v796
        %v949 = vmul.f32 %v933, %v933
        %v950 = vmul.f32 %v934, %v934
        %v951 = vmul.f32 %v935, %v935
        %v952 = vmul.f32 %v936, %v936
        %v953 = vmul.f32 %v937, %v937
        %v954 = vmul.f32 %v938, %v938
        %v955 = vmul.f32 %v939, %v939
        %v956 = vmul.f32 %v940, %v940
        %965 = vrot.lane.b32.xlu0 %v949, 2
        %v966 = vpop.permute.xlu0 %965
        %967 = vrot.lane.b32.xlu0 %v950, 2
        %v968 = vpop.permute.xlu0 %967
        %969 = vrot.lane.b32.xlu0 %v951, 2
        %v970 = vpop.permute.xlu0 %969
        %971 = vrot.lane.b32.xlu0 %v952, 2
        %v972 = vpop.permute.xlu0 %971
        %973 = vrot.lane.b32.xlu0 %v953, 2
        %v974 = vpop.permute.xlu0 %973
        %975 = vrot.lane.b32.xlu0 %v954, 2
        %v976 = vpop.permute.xlu0 %975
        %977 = vrot.lane.b32.xlu0 %v955, 2
        %v978 = vpop.permute.xlu0 %977
        %979 = vrot.lane.b32.xlu0 %v956, 2
        %v980 = vpop.permute.xlu0 %979
        %v989 = vadd.f32 %v941, %v966
        %v990 = vadd.f32 %v942, %v968
        %v991 = vadd.f32 %v943, %v970
        %v992 = vadd.f32 %v944, %v972
        %v993 = vadd.f32 %v945, %v974
        %v994 = vadd.f32 %v946, %v976
        %v995 = vadd.f32 %v947, %v978
        %v996 = vadd.f32 %v948, %v980
        %v997 = vand.u32 2147483647, %v789
        %v998 = vand.u32 2147483647, %v790
        %v999 = vand.u32 2147483647, %v791
        %v1000 = vand.u32 2147483647, %v792
        %v1001 = vand.u32 2147483647, %v793
        %v1002 = vand.u32 2147483647, %v794
        %v1003 = vand.u32 2147483647, %v795
        %v1004 = vand.u32 2147483647, %v796
        %v1005 = vand.u32 2147483647, %v933
        %v1006 = vand.u32 2147483647, %v934
        %v1007 = vand.u32 2147483647, %v935
        %v1008 = vand.u32 2147483647, %v936
        %v1009 = vand.u32 2147483647, %v937
        %v1010 = vand.u32 2147483647, %v938
        %v1011 = vand.u32 2147483647, %v939
        %v1012 = vand.u32 2147483647, %v940
        %v1013 = vmul.f32 %v997, 0.41421357
        %v1014 = vmul.f32 %v998, 0.41421357
        %v1015 = vmul.f32 %v999, 0.41421357
        %v1016 = vmul.f32 %v1000, 0.41421357
        %v1017 = vmul.f32 %v1001, 0.41421357
        %v1018 = vmul.f32 %v1002, 0.41421357
        %v1019 = vmul.f32 %v1003, 0.41421357
        %v1020 = vmul.f32 %v1004, 0.41421357
        %1029 = vrot.lane.b32.xlu0 %v1013, 126
        %v1030 = vpop.permute.xlu0 %1029
        %1031 = vrot.lane.b32.xlu0 %v1014, 126
        %v1032 = vpop.permute.xlu0 %1031
        %1033 = vrot.lane.b32.xlu0 %v1015, 126
        %v1034 = vpop.permute.xlu0 %1033
        %1035 = vrot.lane.b32.xlu0 %v1016, 126
        %v1036 = vpop.permute.xlu0 %1035
        %1037 = vrot.lane.b32.xlu0 %v1017, 126
        %v1038 = vpop.permute.xlu0 %1037
        %1039 = vrot.lane.b32.xlu0 %v1018, 126
        %v1040 = vpop.permute.xlu0 %1039
        %1041 = vrot.lane.b32.xlu0 %v1019, 126
        %v1042 = vpop.permute.xlu0 %1041
        %1043 = vrot.lane.b32.xlu0 %v1020, 126
        %v1044 = vpop.permute.xlu0 %1043
        %vm1053 = vcmp.lt.f32.partialorder %v1005, %v1030
        %vm1054 = vcmp.lt.f32.partialorder %v1006, %v1032
        %vm1055 = vcmp.lt.f32.partialorder %v1007, %v1034
        %vm1056 = vcmp.lt.f32.partialorder %v1008, %v1036
        %vm1057 = vcmp.lt.f32.partialorder %v1009, %v1038
        %vm1058 = vcmp.lt.f32.partialorder %v1010, %v1040
        %vm1059 = vcmp.lt.f32.partialorder %v1011, %v1042
        %vm1060 = vcmp.lt.f32.partialorder %v1012, %v1044
        %v1061 = vmul.f32 %v997, 2.4142137
        %v1062 = vmul.f32 %v998, 2.4142137
        %v1063 = vmul.f32 %v999, 2.4142137
        %v1064 = vmul.f32 %v1000, 2.4142137
        %v1065 = vmul.f32 %v1001, 2.4142137
        %v1066 = vmul.f32 %v1002, 2.4142137
        %v1067 = vmul.f32 %v1003, 2.4142137
        %v1068 = vmul.f32 %v1004, 2.4142137
        %1077 = vrot.lane.b32.xlu0 %v1061, 126
        %v1078 = vpop.permute.xlu0 %1077
        %1079 = vrot.lane.b32.xlu0 %v1062, 126
        %v1080 = vpop.permute.xlu0 %1079
        %1081 = vrot.lane.b32.xlu0 %v1063, 126
        %v1082 = vpop.permute.xlu0 %1081
        %1083 = vrot.lane.b32.xlu0 %v1064, 126
        %v1084 = vpop.permute.xlu0 %1083
        %1085 = vrot.lane.b32.xlu0 %v1065, 126
        %v1086 = vpop.permute.xlu0 %1085
        %1087 = vrot.lane.b32.xlu0 %v1066, 126
        %v1088 = vpop.permute.xlu0 %1087
        %1089 = vrot.lane.b32.xlu0 %v1067, 126
        %v1090 = vpop.permute.xlu0 %1089
        %1091 = vrot.lane.b32.xlu0 %v1068, 126
        %v1092 = vpop.permute.xlu0 %1091
        %vm1101 = vcmp.ge.f32.partialorder %v1005, %v1078
        %vm1102 = vcmp.ge.f32.partialorder %v1006, %v1080
        %vm1103 = vcmp.ge.f32.partialorder %v1007, %v1082
        %vm1104 = vcmp.ge.f32.partialorder %v1008, %v1084
        %vm1105 = vcmp.ge.f32.partialorder %v1009, %v1086
        %vm1106 = vcmp.ge.f32.partialorder %v1010, %v1088
        %vm1107 = vcmp.ge.f32.partialorder %v1011, %v1090
        %vm1108 = vcmp.ge.f32.partialorder %v1012, %v1092
        %1117 = vrot.lane.b32.xlu0 %v933, 2
        %v1118 = vpop.permute.xlu0 %1117
        %1119 = vrot.lane.b32.xlu0 %v934, 2
        %v1120 = vpop.permute.xlu0 %1119
        %1121 = vrot.lane.b32.xlu0 %v935, 2
        %v1122 = vpop.permute.xlu0 %1121
        %1123 = vrot.lane.b32.xlu0 %v936, 2
        %v1124 = vpop.permute.xlu0 %1123
        %1125 = vrot.lane.b32.xlu0 %v937, 2
        %v1126 = vpop.permute.xlu0 %1125
        %1127 = vrot.lane.b32.xlu0 %v938, 2
        %v1128 = vpop.permute.xlu0 %1127
        %1129 = vrot.lane.b32.xlu0 %v939, 2
        %v1130 = vpop.permute.xlu0 %1129
        %1131 = vrot.lane.b32.xlu0 %v940, 2
        %v1132 = vpop.permute.xlu0 %1131
        %v1141 = vmul.f32 %v789, %v1118
        %v1142 = vmul.f32 %v790, %v1120
        %v1143 = vmul.f32 %v791, %v1122
        %v1144 = vmul.f32 %v792, %v1124
        %v1145 = vmul.f32 %v793, %v1126
        %v1146 = vmul.f32 %v794, %v1128
        %v1147 = vmul.f32 %v795, %v1130
        %v1148 = vmul.f32 %v796, %v1132
        %vm1149 = vcmp.gt.f32.partialorder %v1141, 0.0
        %vm1150 = vcmp.gt.f32.partialorder %v1142, 0.0
        %vm1151 = vcmp.gt.f32.partialorder %v1143, 0.0
        %vm1152 = vcmp.gt.f32.partialorder %v1144, 0.0
        %vm1153 = vcmp.gt.f32.partialorder %v1145, 0.0
        %vm1154 = vcmp.gt.f32.partialorder %v1146, 0.0
        %vm1155 = vcmp.gt.f32.partialorder %v1147, 0.0
        %vm1156 = vcmp.gt.f32.partialorder %v1148, 0.0
        %v1165 = vrot.slane %v989, 1
        %v1166 = vrot.slane %v990, 1
        %v1167 = vsel %vm433, %v1165, %v1166
        %v1168 = vrot.slane %v991, 1
        %v1169 = vrot.slane %v992, 1
        %v1170 = vsel %vm433, %v1168, %v1169
        %v1171 = vrot.slane %v993, 1
        %v1172 = vrot.slane %v994, 1
        %v1173 = vsel %vm433, %v1171, %v1172
        %v1174 = vrot.slane %v995, 1
        %v1175 = vrot.slane %v996, 1
        %v1176 = vsel %vm433, %v1174, %v1175
        %1177 = vrot.lane.b32.xlu0 %v1167, 1
        %v1178 = vpop.permute.xlu0 %1177
        %1179 = vrot.lane.b32.xlu0 %v1166, 1
        %v1180 = vpop.permute.xlu0 %1179
        %1181 = vrot.lane.b32.xlu0 %v1170, 1
        %v1182 = vpop.permute.xlu0 %1181
        %1183 = vrot.lane.b32.xlu0 %v1169, 1
        %v1184 = vpop.permute.xlu0 %1183
        %1185 = vrot.lane.b32.xlu0 %v1173, 1
        %v1186 = vpop.permute.xlu0 %1185
        %1187 = vrot.lane.b32.xlu0 %v1172, 1
        %v1188 = vpop.permute.xlu0 %1187
        %1189 = vrot.lane.b32.xlu0 %v1176, 1
        %v1190 = vpop.permute.xlu0 %1189
        %1191 = vrot.lane.b32.xlu0 %v1175, 1
        %v1192 = vpop.permute.xlu0 %1191
        %vm1201 = vcmask 1040384
        %v1202 = vrot.slane %v989, 7
        %v1203 = vrot.slane %v990, 7
        %v1204 = vsel %vm1201, %v1202, %v1203
        %v1205 = vrot.slane %v991, 7
        %v1206 = vrot.slane %v992, 7
        %v1207 = vsel %vm1201, %v1205, %v1206
        %v1208 = vrot.slane %v993, 7
        %v1209 = vrot.slane %v994, 7
        %v1210 = vsel %vm1201, %v1208, %v1209
        %v1211 = vrot.slane %v995, 7
        %v1212 = vrot.slane %v996, 7
        %v1213 = vsel %vm1201, %v1211, %v1212
        %1214 = vrot.lane.b32.xlu0 %v1202, 1
        %v1215 = vpop.permute.xlu0 %1214
        %1216 = vrot.lane.b32.xlu0 %v1204, 1
        %v1217 = vpop.permute.xlu0 %1216
        %1218 = vrot.lane.b32.xlu0 %v1205, 1
        %v1219 = vpop.permute.xlu0 %1218
        %1220 = vrot.lane.b32.xlu0 %v1207, 1
        %v1221 = vpop.permute.xlu0 %1220
        %1222 = vrot.lane.b32.xlu0 %v1208, 1
        %v1223 = vpop.permute.xlu0 %1222
        %1224 = vrot.lane.b32.xlu0 %v1210, 1
        %v1225 = vpop.permute.xlu0 %1224
        %1226 = vrot.lane.b32.xlu0 %v1211, 1
        %v1227 = vpop.permute.xlu0 %1226
        %1228 = vrot.lane.b32.xlu0 %v1213, 1
        %v1229 = vpop.permute.xlu0 %1228
        %v1238 = vsel %vm1149, %v1178, %v1215
        %v1239 = vsel %vm1150, %v1180, %v1217
        %v1240 = vsel %vm1151, %v1182, %v1219
        %v1241 = vsel %vm1152, %v1184, %v1221
        %v1242 = vsel %vm1153, %v1186, %v1223
        %v1243 = vsel %vm1154, %v1188, %v1225
        %v1244 = vsel %vm1155, %v1190, %v1227
        %v1245 = vsel %vm1156, %v1192, %v1229
        %1246 = vrot.lane.b32.xlu0 %v1167, 126
        %v1247 = vpop.permute.xlu0 %1246
        %1248 = vrot.lane.b32.xlu0 %v1166, 126
        %v1249 = vpop.permute.xlu0 %1248
        %1250 = vrot.lane.b32.xlu0 %v1170, 126
        %v1251 = vpop.permute.xlu0 %1250
        %1252 = vrot.lane.b32.xlu0 %v1169, 126
        %v1253 = vpop.permute.xlu0 %1252
        %1254 = vrot.lane.b32.xlu0 %v1173, 126
        %v1255 = vpop.permute.xlu0 %1254
        %1256 = vrot.lane.b32.xlu0 %v1172, 126
        %v1257 = vpop.permute.xlu0 %1256
        %1258 = vrot.lane.b32.xlu0 %v1176, 126
        %v1259 = vpop.permute.xlu0 %1258
        %1260 = vrot.lane.b32.xlu0 %v1175, 126
        %v1261 = vpop.permute.xlu0 %1260
        %1278 = vrot.lane.b32.xlu0 %v1238, 126
        %v1279 = vpop.permute.xlu0 %1278
        %1280 = vrot.lane.b32.xlu0 %v1239, 126
        %v1281 = vpop.permute.xlu0 %1280
        %1282 = vrot.lane.b32.xlu0 %v1240, 126
        %v1283 = vpop.permute.xlu0 %1282
        %1284 = vrot.lane.b32.xlu0 %v1241, 126
        %v1285 = vpop.permute.xlu0 %1284
        %1286 = vrot.lane.b32.xlu0 %v1242, 126
        %v1287 = vpop.permute.xlu0 %1286
        %1288 = vrot.lane.b32.xlu0 %v1243, 126
        %v1289 = vpop.permute.xlu0 %1288
        %1290 = vrot.lane.b32.xlu0 %v1244, 126
        %v1291 = vpop.permute.xlu0 %1290
        %1292 = vrot.lane.b32.xlu0 %v1245, 126
        %v1293 = vpop.permute.xlu0 %1292
        %v1302 = vsel %vm1101, %v1247, %v1279
        %v1303 = vsel %vm1102, %v1249, %v1281
        %v1304 = vsel %vm1103, %v1251, %v1283
        %v1305 = vsel %vm1104, %v1253, %v1285
        %v1306 = vsel %vm1105, %v1255, %v1287
        %v1307 = vsel %vm1106, %v1257, %v1289
        %v1308 = vsel %vm1107, %v1259, %v1291
        %v1309 = vsel %vm1108, %v1261, %v1293
        %1310 = vrot.lane.b32.xlu0 %v989, 125
        %v1311 = vpop.permute.xlu0 %1310
        %1312 = vrot.lane.b32.xlu0 %v990, 125
        %v1313 = vpop.permute.xlu0 %1312
        %1314 = vrot.lane.b32.xlu0 %v991, 125
        %v1315 = vpop.permute.xlu0 %1314
        %1316 = vrot.lane.b32.xlu0 %v992, 125
        %v1317 = vpop.permute.xlu0 %1316
        %1318 = vrot.lane.b32.xlu0 %v993, 125
        %v1319 = vpop.permute.xlu0 %1318
        %1320 = vrot.lane.b32.xlu0 %v994, 125
        %v1321 = vpop.permute.xlu0 %1320
        %1322 = vrot.lane.b32.xlu0 %v995, 125
        %v1323 = vpop.permute.xlu0 %1322
        %1324 = vrot.lane.b32.xlu0 %v996, 125
        %v1325 = vpop.permute.xlu0 %1324
        %v1334 = vsel %vm1053, %v1311, %v1302
        %v1335 = vsel %vm1054, %v1313, %v1303
        %v1336 = vsel %vm1055, %v1315, %v1304
        %v1337 = vsel %vm1056, %v1317, %v1305
        %v1338 = vsel %vm1057, %v1319, %v1306
        %v1339 = vsel %vm1058, %v1321, %v1307
        %v1340 = vsel %vm1059, %v1323, %v1308
        %v1341 = vsel %vm1060, %v1325, %v1309
        %1342 = vrot.lane.b32.xlu0 %v1202, 127
        %v1343 = vpop.permute.xlu0 %1342
        %1344 = vrot.lane.b32.xlu0 %v1204, 127
        %v1345 = vpop.permute.xlu0 %1344
        %1346 = vrot.lane.b32.xlu0 %v1205, 127
        %v1347 = vpop.permute.xlu0 %1346
        %1348 = vrot.lane.b32.xlu0 %v1207, 127
        %v1349 = vpop.permute.xlu0 %1348
        %1350 = vrot.lane.b32.xlu0 %v1208, 127
        %v1351 = vpop.permute.xlu0 %1350
        %1352 = vrot.lane.b32.xlu0 %v1210, 127
        %v1353 = vpop.permute.xlu0 %1352
        %1354 = vrot.lane.b32.xlu0 %v1211, 127
        %v1355 = vpop.permute.xlu0 %1354
        %1356 = vrot.lane.b32.xlu0 %v1213, 127
        %v1357 = vpop.permute.xlu0 %1356
        %1366 = vrot.lane.b32.xlu0 %v1167, 127
        %v1367 = vpop.permute.xlu0 %1366
        %1368 = vrot.lane.b32.xlu0 %v1166, 127
        %v1369 = vpop.permute.xlu0 %1368
        %1370 = vrot.lane.b32.xlu0 %v1170, 127
        %v1371 = vpop.permute.xlu0 %1370
        %1372 = vrot.lane.b32.xlu0 %v1169, 127
        %v1373 = vpop.permute.xlu0 %1372
        %1374 = vrot.lane.b32.xlu0 %v1173, 127
        %v1375 = vpop.permute.xlu0 %1374
        %1376 = vrot.lane.b32.xlu0 %v1172, 127
        %v1377 = vpop.permute.xlu0 %1376
        %1378 = vrot.lane.b32.xlu0 %v1176, 127
        %v1379 = vpop.permute.xlu0 %1378
        %1380 = vrot.lane.b32.xlu0 %v1175, 127
        %v1381 = vpop.permute.xlu0 %1380
        %v1390 = vsel %vm1149, %v1343, %v1367
        %v1391 = vsel %vm1150, %v1345, %v1369
        %v1392 = vsel %vm1151, %v1347, %v1371
        %v1393 = vsel %vm1152, %v1349, %v1373
        %v1394 = vsel %vm1153, %v1351, %v1375
        %v1395 = vsel %vm1154, %v1353, %v1377
        %v1396 = vsel %vm1155, %v1355, %v1379
        %v1397 = vsel %vm1156, %v1357, %v1381
        %1398 = vrot.lane.b32.xlu0 %v1202, 126
        %v1399 = vpop.permute.xlu0 %1398
        %1400 = vrot.lane.b32.xlu0 %v1204, 126
        %v1401 = vpop.permute.xlu0 %1400
        %1402 = vrot.lane.b32.xlu0 %v1205, 126
        %v1403 = vpop.permute.xlu0 %1402
        %1404 = vrot.lane.b32.xlu0 %v1207, 126
        %v1405 = vpop.permute.xlu0 %1404
        %1406 = vrot.lane.b32.xlu0 %v1208, 126
        %v1407 = vpop.permute.xlu0 %1406
        %1408 = vrot.lane.b32.xlu0 %v1210, 126
        %v1409 = vpop.permute.xlu0 %1408
        %1410 = vrot.lane.b32.xlu0 %v1211, 126
        %v1411 = vpop.permute.xlu0 %1410
        %1412 = vrot.lane.b32.xlu0 %v1213, 126
        %v1413 = vpop.permute.xlu0 %1412
        %1430 = vrot.lane.b32.xlu0 %v1390, 126
        %v1431 = vpop.permute.xlu0 %1430
        %1432 = vrot.lane.b32.xlu0 %v1391, 126
        %v1433 = vpop.permute.xlu0 %1432
        %1434 = vrot.lane.b32.xlu0 %v1392, 126
        %v1435 = vpop.permute.xlu0 %1434
        %1436 = vrot.lane.b32.xlu0 %v1393, 126
        %v1437 = vpop.permute.xlu0 %1436
        %1438 = vrot.lane.b32.xlu0 %v1394, 126
        %v1439 = vpop.permute.xlu0 %1438
        %1440 = vrot.lane.b32.xlu0 %v1395, 126
        %v1441 = vpop.permute.xlu0 %1440
        %1442 = vrot.lane.b32.xlu0 %v1396, 126
        %v1443 = vpop.permute.xlu0 %1442
        %1444 = vrot.lane.b32.xlu0 %v1397, 126
        %v1445 = vpop.permute.xlu0 %1444
        %v1454 = vsel %vm1101, %v1399, %v1431
        %v1455 = vsel %vm1102, %v1401, %v1433
        %v1456 = vsel %vm1103, %v1403, %v1435
        %v1457 = vsel %vm1104, %v1405, %v1437
        %v1458 = vsel %vm1105, %v1407, %v1439
        %v1459 = vsel %vm1106, %v1409, %v1441
        %v1460 = vsel %vm1107, %v1411, %v1443
        %v1461 = vsel %vm1108, %v1413, %v1445
        %1462 = vrot.lane.b32.xlu0 %v989, 127
        %v1463 = vpop.permute.xlu0 %1462
        %1464 = vrot.lane.b32.xlu0 %v990, 127
        %v1465 = vpop.permute.xlu0 %1464
        %1466 = vrot.lane.b32.xlu0 %v991, 127
        %v1467 = vpop.permute.xlu0 %1466
        %1468 = vrot.lane.b32.xlu0 %v992, 127
        %v1469 = vpop.permute.xlu0 %1468
        %1470 = vrot.lane.b32.xlu0 %v993, 127
        %v1471 = vpop.permute.xlu0 %1470
        %1472 = vrot.lane.b32.xlu0 %v994, 127
        %v1473 = vpop.permute.xlu0 %1472
        %1474 = vrot.lane.b32.xlu0 %v995, 127
        %v1475 = vpop.permute.xlu0 %1474
        %1476 = vrot.lane.b32.xlu0 %v996, 127
        %v1477 = vpop.permute.xlu0 %1476
        %v1486 = vsel %vm1053, %v1463, %v1454
        %v1487 = vsel %vm1054, %v1465, %v1455
        %v1488 = vsel %vm1055, %v1467, %v1456
        %v1489 = vsel %vm1056, %v1469, %v1457
        %v1490 = vsel %vm1057, %v1471, %v1458
        %v1491 = vsel %vm1058, %v1473, %v1459
        %v1492 = vsel %vm1059, %v1475, %v1460
        %v1493 = vsel %vm1060, %v1477, %v1461
        %1502 = vrot.lane.b32.xlu0 %v1334, 2
        %v1503 = vpop.permute.xlu0 %1502
        %1504 = vrot.lane.b32.xlu0 %v1335, 2
        %v1505 = vpop.permute.xlu0 %1504
        %1506 = vrot.lane.b32.xlu0 %v1336, 2
        %v1507 = vpop.permute.xlu0 %1506
        %1508 = vrot.lane.b32.xlu0 %v1337, 2
        %v1509 = vpop.permute.xlu0 %1508
        %1510 = vrot.lane.b32.xlu0 %v1338, 2
        %v1511 = vpop.permute.xlu0 %1510
        %1512 = vrot.lane.b32.xlu0 %v1339, 2
        %v1513 = vpop.permute.xlu0 %1512
        %1514 = vrot.lane.b32.xlu0 %v1340, 2
        %v1515 = vpop.permute.xlu0 %1514
        %1516 = vrot.lane.b32.xlu0 %v1341, 2
        %v1517 = vpop.permute.xlu0 %1516
        %vm1526 = vcmp.ge.f32.partialorder %v989, %v1503
        %vm1527 = vcmp.ge.f32.partialorder %v990, %v1505
        %vm1528 = vcmp.ge.f32.partialorder %v991, %v1507
        %vm1529 = vcmp.ge.f32.partialorder %v992, %v1509
        %vm1530 = vcmp.ge.f32.partialorder %v993, %v1511
        %vm1531 = vcmp.ge.f32.partialorder %v994, %v1513
        %vm1532 = vcmp.ge.f32.partialorder %v995, %v1515
        %vm1533 = vcmp.ge.f32.partialorder %v996, %v1517
        %1542 = vrot.lane.b32.xlu0 %v1486, 2
        %v1543 = vpop.permute.xlu0 %1542
        %1544 = vrot.lane.b32.xlu0 %v1487, 2
        %v1545 = vpop.permute.xlu0 %1544
        %1546 = vrot.lane.b32.xlu0 %v1488, 2
        %v1547 = vpop.permute.xlu0 %1546
        %1548 = vrot.lane.b32.xlu0 %v1489, 2
        %v1549 = vpop.permute.xlu0 %1548
        %1550 = vrot.lane.b32.xlu0 %v1490, 2
        %v1551 = vpop.permute.xlu0 %1550
        %1552 = vrot.lane.b32.xlu0 %v1491, 2
        %v1553 = vpop.permute.xlu0 %1552
        %1554 = vrot.lane.b32.xlu0 %v1492, 2
        %v1555 = vpop.permute.xlu0 %1554
        %1556 = vrot.lane.b32.xlu0 %v1493, 2
        %v1557 = vpop.permute.xlu0 %1556
        %vm1566 = vcmp.ge.f32.partialorder %v989, %v1543
        %vm1567 = vcmp.ge.f32.partialorder %v990, %v1545
        %vm1568 = vcmp.ge.f32.partialorder %v991, %v1547
        %vm1569 = vcmp.ge.f32.partialorder %v992, %v1549
        %vm1570 = vcmp.ge.f32.partialorder %v993, %v1551
        %vm1571 = vcmp.ge.f32.partialorder %v994, %v1553
        %vm1572 = vcmp.ge.f32.partialorder %v995, %v1555
        %vm1573 = vcmp.ge.f32.partialorder %v996, %v1557
        %vm1574 = vmand %vm1526, %vm1566
        %vm1575 = vmand %vm1527, %vm1567
        %vm1576 = vmand %vm1528, %vm1568
        %vm1577 = vmand %vm1529, %vm1569
        %vm1578 = vmand %vm1530, %vm1570
        %vm1579 = vmand %vm1531, %vm1571
        %vm1580 = vmand %vm1532, %vm1572
        %vm1581 = vmand %vm1533, %vm1573
        %v1582 = vsel %vm1574, %v989, 0.0
        %v1583 = vsel %vm1575, %v990, 0.0
        %v1584 = vsel %vm1576, %v991, 0.0
        %v1585 = vsel %vm1577, %v992, 0.0
        %v1586 = vsel %vm1578, %v993, 0.0
        %v1587 = vsel %vm1579, %v994, 0.0
        %v1588 = vsel %vm1580, %v995, 0.0
        %v1589 = vsel %vm1581, %v996, 0.0
        %vm1590 = vcmask 138265
        %v1591 = vsel %vm1590, %v1582, -inf
        %1592 = vmax.xlane.f32.xlu0 %v1591
        %v1593 = vpop.xlane.xlu0 %1592
        %vm1594 = vcmask 137240
        %v1595 = vsel %vm1594, %v1583, -inf
        %1596 = vmax.xlane.f32.xlu0 %v1595
        %v1597 = vpop.xlane.xlu0 %1596
        %v1598 = vsel %vm1590, %v1584, -inf
        %1599 = vmax.xlane.f32.xlu0 %v1598
        %v1600 = vpop.xlane.xlu0 %1599
        %v1601 = vsel %vm1594, %v1585, -inf
        %1602 = vmax.xlane.f32.xlu0 %v1601
        %v1603 = vpop.xlane.xlu0 %1602
        %v1604 = vsel %vm1590, %v1586, -inf
        %1605 = vmax.xlane.f32.xlu0 %v1604
        %v1606 = vpop.xlane.xlu0 %1605
        %v1607 = vsel %vm1594, %v1587, -inf
        %1608 = vmax.xlane.f32.xlu0 %v1607
        %v1609 = vpop.xlane.xlu0 %1608
        %v1610 = vsel %vm1590, %v1588, -inf
        %1611 = vmax.xlane.f32.xlu0 %v1610
        %v1612 = vpop.xlane.xlu0 %1611
        %v1613 = vsel %vm1594, %v1589, -inf
        %1614 = vmax.xlane.f32.xlu0 %v1613
        %v1615 = vpop.xlane.xlu0 %1614
        %vm1616 = vcmask 1047553
        %v1617 = vsel %vm1616, %v1593, -inf
        %v1618 = vsel %vm433, %v1597, -inf
        %v1619 = vmax.f32 %v1617, %v1618
        %v1620 = vrot.slane %v1619, 4
        %v1621 = vmax.f32 %v1619, %v1620
        %v1622 = vrot.slane %v1621, 2
        %v1623 = vmax.f32 %v1621, %v1622
        %v1624 = vrot.slane %v1623, 1
        %v1625 = vmax.f32 %v1623, %v1624
        %v1626 = vsel %vm1616, %v1600, -inf
        %v1627 = vsel %vm433, %v1603, -inf
        %v1628 = vmax.f32 %v1626, %v1627
        %v1629 = vrot.slane %v1628, 4
        %v1630 = vmax.f32 %v1628, %v1629
        %v1631 = vrot.slane %v1630, 2
        %v1632 = vmax.f32 %v1630, %v1631
        %v1633 = vrot.slane %v1632, 1
        %v1634 = vmax.f32 %v1632, %v1633
        %v1635 = vsel %vm1616, %v1606, -inf
        %v1636 = vsel %vm433, %v1609, -inf
        %v1637 = vmax.f32 %v1635, %v1636
        %v1638 = vrot.slane %v1637, 4
        %v1639 = vmax.f32 %v1637, %v1638
        %v1640 = vrot.slane %v1639, 2
        %v1641 = vmax.f32 %v1639, %v1640
        %v1642 = vrot.slane %v1641, 1
        %v1643 = vmax.f32 %v1641, %v1642
        %v1644 = vsel %vm1616, %v1612, -inf
        %v1645 = vsel %vm433, %v1615, -inf
        %v1646 = vmax.f32 %v1644, %v1645
        %v1647 = vrot.slane %v1646, 4
        %v1648 = vmax.f32 %v1646, %v1647
        %v1649 = vrot.slane %v1648, 2
        %v1650 = vmax.f32 %v1648, %v1649
        %v1651 = vrot.slane %v1650, 1
        %v1652 = vmax.f32 %v1650, %v1651
        %v1653 = vmul.f32 %v1625, 0.0225
        %v1654 = vmul.f32 %v1634, 0.0225
        %v1655 = vmul.f32 %v1643, 0.0225
        %v1656 = vmul.f32 %v1652, 0.0225
        %v1657 = vmul.f32 %v1653, 0.0025
        %v1658 = vmul.f32 %v1654, 0.0025
        %v1659 = vmul.f32 %v1655, 0.0025
        %v1660 = vmul.f32 %v1656, 0.0025
        %vm1661 = vcmp.ge.f32.partialorder %v1582, %v1653
        %vm1662 = vcmp.ge.f32.partialorder %v1583, %v1653
        %vm1663 = vcmp.ge.f32.partialorder %v1584, %v1654
        %vm1664 = vcmp.ge.f32.partialorder %v1585, %v1654
        %vm1665 = vcmp.ge.f32.partialorder %v1586, %v1655
        %vm1666 = vcmp.ge.f32.partialorder %v1587, %v1655
        %vm1667 = vcmp.ge.f32.partialorder %v1588, %v1656
        %vm1668 = vcmp.ge.f32.partialorder %v1589, %v1656
        %vm1669 = vcmp.ge.f32.partialorder %v1582, %v1657
        %vm1670 = vcmp.ge.f32.partialorder %v1583, %v1657
        %vm1671 = vcmp.ge.f32.partialorder %v1584, %v1658
        %vm1672 = vcmp.ge.f32.partialorder %v1585, %v1658
        %vm1673 = vcmp.ge.f32.partialorder %v1586, %v1659
        %vm1674 = vcmp.ge.f32.partialorder %v1587, %v1659
        %vm1675 = vcmp.ge.f32.partialorder %v1588, %v1660
        %vm1676 = vcmp.ge.f32.partialorder %v1589, %v1660
        %v1677 = vsel %vm1669, 75.0, 0.0
        %v1678 = vsel %vm1670, 75.0, 0.0
        %v1679 = vsel %vm1671, 75.0, 0.0
        %v1680 = vsel %vm1672, 75.0, 0.0
        %v1681 = vsel %vm1673, 75.0, 0.0
        %v1682 = vsel %vm1674, 75.0, 0.0
        %v1683 = vsel %vm1675, 75.0, 0.0
        %v1684 = vsel %vm1676, 75.0, 0.0
        %v1685 = vsel %vm1661, 255.0, %v1677
        %v1686 = vsel %vm1662, 255.0, %v1678
        %v1687 = vsel %vm1663, 255.0, %v1679
        %v1688 = vsel %vm1664, 255.0, %v1680
        %v1689 = vsel %vm1665, 255.0, %v1681
        %v1690 = vsel %vm1666, 255.0, %v1682
        %v1691 = vsel %vm1667, 255.0, %v1683
        %v1692 = vsel %vm1668, 255.0, %v1684
        %vm1693 = vcmask 130048
        %1694 = vst.msk [vmem:[%s112] sm:$0xff] %vm1693, 0.0
        %1695 = vst.msk [vmem:[%s112 + $0x8] sm:$0xff] %vm1693, 0.0
        %1696 = vst.msk [vmem:[%s112 + $0x10] sm:$0xff] %vm1693, 0.0
        %1697 = vst.msk [vmem:[%s112 + $0x18] sm:$0xff] %vm1693, 0.0
        %1698 = vst.msk [vmem:[%s112 + $0x20] sm:$0xff] %vm1693, 0.0
        %1699 = vst.msk [vmem:[%s112 + $0x28] sm:$0xff] %vm1693, 0.0
        %1700 = vst.msk [vmem:[%s112 + $0x30] sm:$0xff] %vm1693, 0.0
        %1701 = vst.msk [vmem:[%s112 + $0x38] sm:$0xff] %vm1693, 0.0
        %1710 = vrot.lane.b32.xlu0 %v1685, 126
        %v1711 = vpop.permute.xlu0 %1710
        %1712 = vrot.lane.b32.xlu0 %v1686, 126
        %v1713 = vpop.permute.xlu0 %1712
        %1714 = vrot.lane.b32.xlu0 %v1687, 126
        %v1715 = vpop.permute.xlu0 %1714
        %1716 = vrot.lane.b32.xlu0 %v1688, 126
        %v1717 = vpop.permute.xlu0 %1716
        %1718 = vrot.lane.b32.xlu0 %v1689, 126
        %v1719 = vpop.permute.xlu0 %1718
        %1720 = vrot.lane.b32.xlu0 %v1690, 126
        %v1721 = vpop.permute.xlu0 %1720
        %1722 = vrot.lane.b32.xlu0 %v1691, 126
        %v1723 = vpop.permute.xlu0 %1722
        %1724 = vrot.lane.b32.xlu0 %v1692, 126
        %v1725 = vpop.permute.xlu0 %1724
        %vm1734 = vcmask 121865
        %1735 = vst.msk [vmem:[%s112] sm:$0xfe] %vm1734, %v1711
        %vm1736 = vcmask 120840
        %1737 = vst.msk [vmem:[%s112 + $0x8] sm:$0x7f] %vm1736, %v1713
        %1738 = vst.msk [vmem:[%s112 + $0x10] sm:$0xfe] %vm1734, %v1715
        %1739 = vst.msk [vmem:[%s112 + $0x18] sm:$0x7f] %vm1736, %v1717
        %1740 = vst.msk [vmem:[%s112 + $0x20] sm:$0xfe] %vm1734, %v1719
        %1741 = vst.msk [vmem:[%s112 + $0x28] sm:$0x7f] %vm1736, %v1721
        %1742 = vst.msk [vmem:[%s112 + $0x30] sm:$0xfe] %vm1734, %v1723
        %1743 = vst.msk [vmem:[%s112 + $0x38] sm:$0x7f] %vm1736, %v1725
        %s1744 = sand.u32 %s49, 1
        %s1745 = scalar_lea.sflag [#allocation3], %s1744
        %s1746 = sand.u32 %s49, 1
        %s1747 = smul.addr %s1746, 64
        %s1748 = scalar_lea.vmem [#allocation2], %s1747
        // Predicated region
        $region25: #{tpu_custom_call.1} parent=23 // pred_check
          %p1749 = pneg %p59
        $region26: #{tpu_custom_call.1} parent=23 // pred_check_branch
          %1751 = sbr.rel (%p1749) target = $region28
        $region27: #{tpu_custom_call.1} parent=23 // pred_region
          %s1752 = smul.u32 4, %s15
          %s1754 = ssub.s32 1024, 1024
          %1755 = vsyncadd %s1745, %s1754
          %s1756 = smul.addr %s1752, 2
          %s1757 = smul.addr %s1756, 128
          %s1758 = scalar_lea.hbm %s1, %s1757
          %s1759 = sshll.u32 %s1748, 4
          %s1760 = int_to_ptr.vmem [resolvable:$true] %s1759
          %1765 = dma.vmem_to_hbm [thread:$0]  %s1760, 1024, %s1758, %s1745, 128, 128, 8
        $region28: #{tpu_custom_call.1} parent=23 // pred_fallthru
          _
      $region24: #{tpu_custom_call.1} parent=5 // pred_fallthru
        _
      %p1766 = scmp.le.s32.totalorder 2, %s10
      // Predicated region
      $region29: #{tpu_custom_call.1} parent=5 // pred_check
        %p1767 = pneg %p1766
      $region30: #{tpu_custom_call.1} parent=5 // pred_check_branch
        %1769 = sbr.rel (%p1767) target = $region32
      $region31: #{tpu_custom_call.1} parent=5 // pred_region
        %s1770 = ssub.s32 %s10, 2
        // Predicated region
        $region33: #{tpu_custom_call.1} parent=31 // pred_check
          %p1771 = pneg %p65
        $region34: #{tpu_custom_call.1} parent=31 // pred_check_branch
          %1773 = sbr.rel (%p1771) target = $region36
        $region35: #{tpu_custom_call.1} parent=31 // pred_region
          %s1774 = sand.u32 %s50, 1
          %s1775 = scalar_lea.sflag [#allocation3], %s1774
          %s1776 = sand.u32 %s50, 1
          %s1777 = smul.addr %s1776, 64
          %s1778 = scalar_lea.vmem [#allocation2], %s1777
          %1779 = dma.done %s1775, 1024
        $region36: #{tpu_custom_call.1} parent=31 // pred_fallthru
          _
      $region32: #{tpu_custom_call.1} parent=5 // pred_fallthru
        _
    $region6: #{tpu_custom_call.1} parent=1 // loop_footer
      %s14 = sadd.s32 1, %s10
    $region7: #{tpu_custom_call.1} parent=1 // loop_footer_branch
      %9 = sbr.rel target = $region3
    $region8: #{tpu_custom_call.1} parent=1 // loop_exit
      _
    %1780 = vsyncpa [#allocation3], 1
    %s1781 = scalar_lea.sflag [#allocation3], 1
    %1782 = vsyncpa %s1781, 1

</llo_original>
